<compile_context>
chip_gen: v7x
topology: tpu7x:2x2x1
jax: 0.10.0
libtpu: 0.0.40
codegen_flags: <defaults>
</compile_context>

<pallas_src>
import functools

import jax
import jax.numpy as jnp
from jax import lax
from jax.experimental import pallas as pl
from jax.experimental.pallas import tpu as pltpu


def _cw_attn_kernel(x_ref, wqk_ref, bqk_ref, sparse_ref, idx_ref, sel_ref, *,
                    scale, bt, C, KP, KK, CQ):
    xb = x_ref[...]                                     # (bt*C, X) f32

    # Fused Q|K projection: one (bt*C, X) @ (X, 2*KP) MXU matmul.  Padded
    # k_dim columns are exactly zero, so they contribute nothing to Q @ K.T.
    qk = jnp.dot(xb, wqk_ref[...],
                 preferred_element_type=jnp.float32) + bqk_ref[...]

    lane_c = lax.broadcasted_iota(jnp.int32, (1, C), 1)
    idx_lane = lax.broadcasted_iota(jnp.int32, (1, KK), 1)
    inv_c = jnp.float32(1.0 / C)

    for bi in range(bt):                                # static unroll over batch
        r0 = bi * C
        q_b = qk[r0:r0 + C, :KP]                        # (C, KP)
        k_b = qk[r0:r0 + C, KP:]                        # (C, KP)

        # Channel importance = column mean of softmax(Q K^T * scale).  The
        # query axis is processed in CQ-row chunks so only (CQ, C) f32
        # intermediates are live; attn itself is never materialized.
        imp = jnp.zeros((1, C), jnp.float32)
        for c0 in range(0, C, CQ):
            # scores[q, m] = sum_j Q[q, j] * K[m, j]   (RHS contracts on its
            # minor dim -> MXU transposed-operand path, same lowering as
            # pl.dot(..., trans_b=True); no explicit XLU transpose).
            s = lax.dot_general(q_b[c0:c0 + CQ, :], k_b,
                                (((1,), (1,)), ((), ())),
                                preferred_element_type=jnp.float32) * scale
            m = jnp.max(s, axis=-1, keepdims=True)
            e = jnp.exp(s - m)
            # Exact reciprocal keeps parity with the f32 reference softmax;
            # pl.reciprocal(..., approx=True) would move this onto the EUP.
            r = 1.0 / jnp.sum(e, axis=-1, keepdims=True)
            imp = imp + jnp.sum(e * r, axis=0, keepdims=True)
        imp = imp * inv_c                               # (1, C)

        # Top-KK channels via repeated masked argmax (lowest index wins ties,
        # matching lax.top_k).  Each one-hot row is written straight into the
        # VMEM scratch.  (A packed single max+argmax reduction would need to
        # drop mantissa bits to fit the index, breaking exact top_k parity, so
        # the two (1, C) reductions per step are kept.)
        idx_row = jnp.zeros((1, KK), jnp.int32)
        cur = imp
        for i in range(KK):
            mval = jnp.max(cur)
            sel_idx = jnp.min(jnp.where(cur == mval, lane_c, jnp.int32(C)))
            sel_ref[pl.ds(i, 1), :] = (lane_c == sel_idx).astype(jnp.float32)
            idx_row = jnp.where(idx_lane == i, sel_idx, idx_row)
            cur = jnp.where(lane_c == sel_idx, -jnp.inf, cur)

        # Gather the kept channels with a one-hot MXU matmul (no dynamic VMEM
        # gathers).  TODO(synk): for large C with a busy MXU, replace with KK
        # dynamic row copies (x_ref[pl.ds(row, 1), :]) once idx lives in SMEM.
        sparse_ref[bi] = jnp.dot(sel_ref[...], xb[r0:r0 + C, :],
                                 preferred_element_type=jnp.float32
                                 ).astype(sparse_ref.dtype)
        idx_ref[bi] = idx_row


def _pick_bt(B, C):
    """Batch elements per grid step.

    Aim to fill the MXU M dimension (~256 rows) in the fused projection while
    keeping >=2 grid steps when B > 1 (so v7x's second TensorCore gets work)
    and keeping the flattened (Bt*C, X) x-block 8-sublane aligned.
    """
    target = max(1, 256 // max(C, 1))
    candidates = [bt for bt in range(1, B + 1)
                  if B % bt == 0 and (bt == B or (bt * C) % 8 == 0)]
    preferred = [bt for bt in candidates
                 if bt <= target and (B // bt >= 2 or B == 1)]
    if preferred:
        return max(preferred)
    multi_step = [bt for bt in candidates if B // bt >= 2 or B == 1]
    if multi_step:
        return min(multi_step)
    return B


def channelwise_attention(x, wq, bq, wk, bk, *, sparsity_ratio=0.3):
    """x: (B, C, d_model), wq/wk: (d_model, k_dim), bq/bk: (k_dim,).

    Returns (sparse_feat (B, k, d_model) f32, topk_indices (B, k) int32, k).
    """
    # TODO(synk): on v6e/v7x, keep x / weights in bf16 for the three MXU
    # contractions (f32 MXU is emulated multi-pass) when bit-exact parity with
    # the f32 reference is not required.
    x = x.astype(jnp.float32)
    B, C, X = x.shape
    k_dim = wq.shape[1]
    kk = max(1, int(C * sparsity_ratio))
    scale = float(k_dim) ** -0.5

    # Pad k_dim to a 128-lane multiple and fuse Wq|Wk into one weight matrix so
    # Q and K come out of a single 2*KP-wide MXU matmul.
    KP = 128 * pl.cdiv(k_dim, 128)
    pad_w = ((0, 0), (0, KP - k_dim))
    wqk = jnp.concatenate([jnp.pad(wq.astype(jnp.float32), pad_w),
                           jnp.pad(wk.astype(jnp.float32), pad_w)], axis=1)
    bqk = jnp.concatenate([jnp.pad(bq.astype(jnp.float32), (0, KP - k_dim)),
                           jnp.pad(bk.astype(jnp.float32), (0, KP - k_dim))],
                          axis=0).reshape(1, 2 * KP)

    bt = _pick_bt(B, C)
    cq = min(C, 256)          # query chunk: bounds live (CQ, C) intermediates
    x2d = x.reshape(B * C, X)

    kernel = functools.partial(_cw_attn_kernel, scale=scale, bt=bt, C=C,
                               KP=KP, KK=kk, CQ=cq)

    # Explicit VMEM budget (v5e default scoped limit is only 16 MiB; v7x has
    # 64 MiB physical): double-buffered x/out blocks + single-buffered weights
    # + live intermediates, 2x headroom, clamped to the v7x cap.
    xblk = bt * C * X * 4
    wblk = (X * 2 * KP + 2 * KP) * 4
    oblk = (bt * kk * X + bt * kk) * 4
    live = (bt * C * 2 * KP + 3 * cq * C + kk * C) * 4
    vmem_limit = int(min(max(2 * (2 * xblk + wblk + 2 * oblk + live),
                             32 << 20), 64 << 20))

    cost = pl.CostEstimate(
        flops=B * (2 * C * X * 2 * KP + 2 * C * C * KP + 2 * kk * C * X),
        transcendentals=B * C * C,
        bytes_accessed=4 * (x.size + wqk.size + bqk.size + B * kk * X + B * kk),
    )

    out_shape = (jax.ShapeDtypeStruct((B, kk, X), x.dtype),
                 jax.ShapeDtypeStruct((B, 1, kk), jnp.int32))

    def build(single_buffer_weights):
        w_kwargs = ({"pipeline_mode": pl.Buffered(1)}
                    if single_buffer_weights else {})
        grid_spec = pltpu.PrefetchScalarGridSpec(
            num_scalar_prefetch=0,
            grid=(B // bt,),                       # bt batch elements per step
            in_specs=[
                pl.BlockSpec((bt * C, X), lambda b: (b, 0)),       # x rows
                pl.BlockSpec((X, 2 * KP), lambda b: (0, 0), **w_kwargs),
                pl.BlockSpec((1, 2 * KP), lambda b: (0, 0), **w_kwargs),
            ],
            out_specs=[
                pl.BlockSpec((bt, kk, X), lambda b: (b, 0, 0)),    # sparse_feat
                pl.BlockSpec((bt, 1, kk), lambda b: (b, 0, 0)),    # indices
            ],
            scratch_shapes=[pltpu.VMEM((kk, C), jnp.float32)],     # one-hot sel
        )
        return pl.pallas_call(
            kernel,
            out_shape=out_shape,
            grid_spec=grid_spec,
            compiler_params=pltpu.CompilerParams(
                dimension_semantics=("parallel",),   # shard batch steps (v7x)
                vmem_limit_bytes=vmem_limit,
            ),
            cost_estimate=cost,
        )

    try:
        sparse, idx3 = build(True)(x2d, wqk, bqk)
    except Exception:
        # Fallback if this jax build rejects pl.Buffered(1) on the main
        # pallas_call pipeline (the only non-essential feature used here).
        sparse, idx3 = build(False)(x2d, wqk, bqk)

    return sparse, idx3.reshape(B, kk), kk


if __name__ == "__main__":
    key = jax.random.PRNGKey(0)
    B, C, d_model = 2, 16, 32
    k_dim = 1
    sparsity_ratio = 0.3

    k1, k2, k3, k4, k5 = jax.random.split(key, 5)
    x = jax.random.normal(k1, (B, C, d_model), dtype=jnp.float32)
    bound = 1.0 / (d_model ** 0.5)
    wq = jax.random.uniform(k2, (d_model, k_dim), jnp.float32, -bound, bound)
    bq = jax.random.uniform(k3, (k_dim,), jnp.float32, -bound, bound)
    wk = jax.random.uniform(k4, (d_model, k_dim), jnp.float32, -bound, bound)
    bk = jax.random.uniform(k5, (k_dim,), jnp.float32, -bound, bound)

    sparse, idxs, k_out = channelwise_attention(
        x, wq, bq, wk, bk, sparsity_ratio=sparsity_ratio)
    sparse = jax.block_until_ready(sparse)
    idxs = jax.block_until_ready(idxs)

    # Pure-JAX reference of the PyTorch forward.
    scale = k_dim ** (-0.5)
    xr = x.reshape(B * C, d_model)
    Q = (xr @ wq + bq).reshape(B, C, k_dim)
    K = (xr @ wk + bk).reshape(B, C, k_dim)
    scores = jnp.einsum('bck,bmk->bcm', Q, K) * scale
    attn = jax.nn.softmax(scores, axis=-1)
    imp = attn.mean(axis=1)
    k_ref = max(1, int(C * sparsity_ratio))
    _, idx_ref = jax.lax.top_k(imp, k_ref)
    sparse_ref = jnp.take_along_axis(x, idx_ref[:, :, None], axis=1)

    assert k_out == k_ref
    assert sparse.shape == (B, k_ref, d_model) and idxs.shape == (B, k_ref)
    assert bool(jnp.all(idxs == idx_ref)), (idxs, idx_ref)
    assert bool(jnp.allclose(sparse, sparse_ref, atol=1e-5, rtol=1e-5))

    print("KERNEL_OK")
</pallas_src>

<mosaic_0001>
module attributes {stable_mosaic.version = 11 : i64} {
  func.func @_cw_attn_kernel(%arg0: i32, %arg1: memref<16x32xf32, #tpu.memory_space<vmem>>, %arg2: memref<32x256xf32, #tpu.memory_space<vmem>>, %arg3: memref<1x256xf32, #tpu.memory_space<vmem>>, %arg4: memref<1x4x32xf32, #tpu.memory_space<vmem>>, %arg5: memref<1x1x4xi32, #tpu.memory_space<vmem>>, %arg6: memref<4x16xf32, #tpu.memory_space<vmem>>) attributes {dimension_semantics = [#tpu.dimension_semantics<parallel>], iteration_bounds = array<i64: 2>, scalar_prefetch = 0 : i64, scratch_operands = 1 : i64, tpu.core_type = #tpu.core_type<tc>, window_params = [{transform_indices = @transform_0, window_bounds = array<i64: 16, 32>}, {pipeline_mode = #tpu.pipeline_mode<synchronous>, transform_indices = @transform_1, window_bounds = array<i64: 32, 256>}, {pipeline_mode = #tpu.pipeline_mode<synchronous>, transform_indices = @transform_2, window_bounds = array<i64: 1, 256>}, {transform_indices = @transform_3, window_bounds = array<i64: 1, 4, 32>}, {transform_indices = @transform_4, window_bounds = array<i64: 1, 1, 4>}]} {
    %c0 = arith.constant 0 : index
    %c0_0 = arith.constant 0 : index
    %0 = vector.load %arg1[%c0, %c0_0] : memref<16x32xf32, #tpu.memory_space<vmem>>, vector<16x32xf32>
    %c0_1 = arith.constant 0 : index
    %c0_2 = arith.constant 0 : index
    %1 = vector.load %arg2[%c0_1, %c0_2] : memref<32x256xf32, #tpu.memory_space<vmem>>, vector<32x256xf32>
    %cst = arith.constant dense<0.000000e+00> : vector<16x256xf32>
    %2 = tpu.matmul %0, %1, %cst {dimension_numbers = #tpu.dot_dimension_numbers<[1], [0], [0], [1], [0, 0, 1, 1], [], []>} : vector<16x32xf32>, vector<32x256xf32>, vector<16x256xf32> -> vector<16x256xf32>
    %c0_3 = arith.constant 0 : index
    %c0_4 = arith.constant 0 : index
    %3 = vector.load %arg3[%c0_3, %c0_4] : memref<1x256xf32, #tpu.memory_space<vmem>>, vector<1x256xf32>
    %4 = vector.broadcast %3 : vector<1x256xf32> to vector<16x256xf32>
    %5 = arith.addf %2, %4 : vector<16x256xf32>
    %6 = tpu.iota {dimensions = array<i32: 1>} : vector<1x16xi32>
    %7 = tpu.iota {dimensions = array<i32: 1>} : vector<1x4xi32>
    %8 = vector.extract_strided_slice %5 {offsets = [0, 0], sizes = [16, 128], strides = [1, 1]} : vector<16x256xf32> to vector<16x128xf32>
    %9 = vector.extract_strided_slice %5 {offsets = [0, 128], sizes = [16, 128], strides = [1, 1]} : vector<16x256xf32> to vector<16x128xf32>
    %cst_5 = arith.constant 0.000000e+00 : f32
    %10 = vector.broadcast %cst_5 : f32 to vector<1x16xf32>
    %cst_6 = arith.constant dense<0.000000e+00> : vector<16x16xf32>
    %11 = tpu.matmul %8, %9, %cst_6 {dimension_numbers = #tpu.dot_dimension_numbers<[1], [1], [0], [0], [0, 0, 1, 0], [], []>} : vector<16x128xf32>, vector<16x128xf32>, vector<16x16xf32> -> vector<16x16xf32>
    %cst_7 = arith.constant 1.000000e+00 : f32
    %12 = vector.broadcast %cst_7 : f32 to vector<16x16xf32>
    %13 = arith.mulf %11, %12 : vector<16x16xf32>
    %cst_8 = arith.constant dense<0xFF800000> : vector<16xf32>
    %14 = vector.multi_reduction <maximumf>, %13, %cst_8 [1] : vector<16x16xf32> to vector<16xf32>
    %15 = vector.shape_cast %14 : vector<16xf32> to vector<16x1xf32>
    %16 = vector.broadcast %15 : vector<16x1xf32> to vector<16x16xf32>
    %17 = arith.subf %13, %16 : vector<16x16xf32>
    %18 = math.exp %17 : vector<16x16xf32>
    %cst_9 = arith.constant dense<0.000000e+00> : vector<16xf32>
    %19 = vector.multi_reduction <add>, %18, %cst_9 [1] : vector<16x16xf32> to vector<16xf32>
    %20 = vector.shape_cast %19 : vector<16xf32> to vector<16x1xf32>
    %cst_10 = arith.constant 1.000000e+00 : f32
    %21 = vector.broadcast %cst_10 : f32 to vector<16x1xf32>
    %22 = arith.divf %21, %20 : vector<16x1xf32>
    %23 = vector.broadcast %22 : vector<16x1xf32> to vector<16x16xf32>
    %24 = arith.mulf %18, %23 : vector<16x16xf32>
    %cst_11 = arith.constant dense<0.000000e+00> : vector<16xf32>
    %25 = vector.multi_reduction <add>, %24, %cst_11 [0] : vector<16x16xf32> to vector<16xf32>
    %26 = vector.shape_cast %25 : vector<16xf32> to vector<1x16xf32>
    %27 = arith.addf %10, %26 : vector<1x16xf32>
    %cst_12 = arith.constant 6.250000e-02 : f32
    %28 = vector.broadcast %cst_12 : f32 to vector<1x16xf32>
    %29 = arith.mulf %27, %28 : vector<1x16xf32>
    %c0_i32 = arith.constant 0 : i32
    %30 = vector.broadcast %c0_i32 : i32 to vector<1x4xi32>
    %31 = vector.shape_cast %29 : vector<1x16xf32> to vector<1x1x16xf32>
    %cst_13 = arith.constant dense<0xFF800000> : vector<1xf32>
    %32 = vector.multi_reduction <maximumf>, %31, %cst_13 [1, 2] : vector<1x1x16xf32> to vector<1xf32>
    %33 = vector.shape_cast %32 : vector<1xf32> to vector<1x1x1xf32>
    %34 = vector.extract %33[0, 0, 0] : f32 from vector<1x1x1xf32>
    %35 = vector.broadcast %34 : f32 to vector<1x16xf32>
    %36 = arith.cmpf oeq, %29, %35 : vector<1x16xf32>
    %c16_i32 = arith.constant 16 : i32
    %37 = vector.broadcast %c16_i32 : i32 to vector<1x16xi32>
    %38 = arith.select %36, %6, %37 : vector<1x16xi1>, vector<1x16xi32>
    %39 = vector.shape_cast %38 : vector<1x16xi32> to vector<1x1x16xi32>
    %cst_14 = arith.constant dense<2147483647> : vector<1xi32>
    %40 = vector.multi_reduction <minsi>, %39, %cst_14 [1, 2] : vector<1x1x16xi32> to vector<1xi32>
    %41 = vector.shape_cast %40 : vector<1xi32> to vector<1x1x1xi32>
    %42 = vector.extract %41[0, 0, 0] : i32 from vector<1x1x1xi32>
    %43 = vector.broadcast %42 : i32 to vector<1x16xi32>
    %44 = arith.cmpi eq, %6, %43 : vector<1x16xi32>
    %45 = arith.extui %44 : vector<1x16xi1> to vector<1x16xi32>
    %46 = arith.sitofp %45 : vector<1x16xi32> to vector<1x16xf32>
    %c0_15 = arith.constant 0 : index
    %c0_16 = arith.constant 0 : index
    %47 = vector.load %arg6[%c0_15, %c0_16] : memref<4x16xf32, #tpu.memory_space<vmem>>, vector<1x16xf32>
    tpu.vector_store %arg6[%c0_15, %c0_16], %46 {strides = array<i32>} : memref<4x16xf32, #tpu.memory_space<vmem>>, vector<1x16xf32>,
    %c0_i32_17 = arith.constant 0 : i32
    %48 = vector.broadcast %c0_i32_17 : i32 to vector<1x4xi32>
    %49 = arith.cmpi eq, %7, %48 : vector<1x4xi32>
    %50 = vector.broadcast %42 : i32 to vector<1x4xi32>
    %51 = arith.select %49, %50, %30 : vector<1x4xi1>, vector<1x4xi32>
    %52 = vector.broadcast %42 : i32 to vector<1x16xi32>
    %53 = arith.cmpi eq, %6, %52 : vector<1x16xi32>
    %cst_18 = arith.constant 0xFF800000 : f32
    %54 = vector.broadcast %cst_18 : f32 to vector<1x16xf32>
    %55 = arith.select %53, %54, %29 : vector<1x16xi1>, vector<1x16xf32>
    %56 = vector.shape_cast %55 : vector<1x16xf32> to vector<1x1x16xf32>
    %cst_19 = arith.constant dense<0xFF800000> : vector<1xf32>
    %57 = vector.multi_reduction <maximumf>, %56, %cst_19 [1, 2] : vector<1x1x16xf32> to vector<1xf32>
    %58 = vector.shape_cast %57 : vector<1xf32> to vector<1x1x1xf32>
    %59 = vector.extract %58[0, 0, 0] : f32 from vector<1x1x1xf32>
    %60 = vector.broadcast %59 : f32 to vector<1x16xf32>
    %61 = arith.cmpf oeq, %55, %60 : vector<1x16xf32>
    %c16_i32_20 = arith.constant 16 : i32
    %62 = vector.broadcast %c16_i32_20 : i32 to vector<1x16xi32>
    %63 = arith.select %61, %6, %62 : vector<1x16xi1>, vector<1x16xi32>
    %64 = vector.shape_cast %63 : vector<1x16xi32> to vector<1x1x16xi32>
    %cst_21 = arith.constant dense<2147483647> : vector<1xi32>
    %65 = vector.multi_reduction <minsi>, %64, %cst_21 [1, 2] : vector<1x1x16xi32> to vector<1xi32>
    %66 = vector.shape_cast %65 : vector<1xi32> to vector<1x1x1xi32>
    %67 = vector.extract %66[0, 0, 0] : i32 from vector<1x1x1xi32>
    %68 = vector.broadcast %67 : i32 to vector<1x16xi32>
    %69 = arith.cmpi eq, %6, %68 : vector<1x16xi32>
    %70 = arith.extui %69 : vector<1x16xi1> to vector<1x16xi32>
    %71 = arith.sitofp %70 : vector<1x16xi32> to vector<1x16xf32>
    %c1 = arith.constant 1 : index
    %c0_22 = arith.constant 0 : index
    %72 = vector.load %arg6[%c1, %c0_22] : memref<4x16xf32, #tpu.memory_space<vmem>>, vector<1x16xf32>
    tpu.vector_store %arg6[%c1, %c0_22], %71 {strides = array<i32>} : memref<4x16xf32, #tpu.memory_space<vmem>>, vector<1x16xf32>,
    %c1_i32 = arith.constant 1 : i32
    %73 = vector.broadcast %c1_i32 : i32 to vector<1x4xi32>
    %74 = arith.cmpi eq, %7, %73 : vector<1x4xi32>
    %75 = vector.broadcast %67 : i32 to vector<1x4xi32>
    %76 = arith.select %74, %75, %51 : vector<1x4xi1>, vector<1x4xi32>
    %77 = vector.broadcast %67 : i32 to vector<1x16xi32>
    %78 = arith.cmpi eq, %6, %77 : vector<1x16xi32>
    %cst_23 = arith.constant 0xFF800000 : f32
    %79 = vector.broadcast %cst_23 : f32 to vector<1x16xf32>
    %80 = arith.select %78, %79, %55 : vector<1x16xi1>, vector<1x16xf32>
    %81 = vector.shape_cast %80 : vector<1x16xf32> to vector<1x1x16xf32>
    %cst_24 = arith.constant dense<0xFF800000> : vector<1xf32>
    %82 = vector.multi_reduction <maximumf>, %81, %cst_24 [1, 2] : vector<1x1x16xf32> to vector<1xf32>
    %83 = vector.shape_cast %82 : vector<1xf32> to vector<1x1x1xf32>
    %84 = vector.extract %83[0, 0, 0] : f32 from vector<1x1x1xf32>
    %85 = vector.broadcast %84 : f32 to vector<1x16xf32>
    %86 = arith.cmpf oeq, %80, %85 : vector<1x16xf32>
    %c16_i32_25 = arith.constant 16 : i32
    %87 = vector.broadcast %c16_i32_25 : i32 to vector<1x16xi32>
    %88 = arith.select %86, %6, %87 : vector<1x16xi1>, vector<1x16xi32>
    %89 = vector.shape_cast %88 : vector<1x16xi32> to vector<1x1x16xi32>
    %cst_26 = arith.constant dense<2147483647> : vector<1xi32>
    %90 = vector.multi_reduction <minsi>, %89, %cst_26 [1, 2] : vector<1x1x16xi32> to vector<1xi32>
    %91 = vector.shape_cast %90 : vector<1xi32> to vector<1x1x1xi32>
    %92 = vector.extract %91[0, 0, 0] : i32 from vector<1x1x1xi32>
    %93 = vector.broadcast %92 : i32 to vector<1x16xi32>
    %94 = arith.cmpi eq, %6, %93 : vector<1x16xi32>
    %95 = arith.extui %94 : vector<1x16xi1> to vector<1x16xi32>
    %96 = arith.sitofp %95 : vector<1x16xi32> to vector<1x16xf32>
    %c2 = arith.constant 2 : index
    %c0_27 = arith.constant 0 : index
    %97 = vector.load %arg6[%c2, %c0_27] : memref<4x16xf32, #tpu.memory_space<vmem>>, vector<1x16xf32>
    tpu.vector_store %arg6[%c2, %c0_27], %96 {strides = array<i32>} : memref<4x16xf32, #tpu.memory_space<vmem>>, vector<1x16xf32>,
    %c2_i32 = arith.constant 2 : i32
    %98 = vector.broadcast %c2_i32 : i32 to vector<1x4xi32>
    %99 = arith.cmpi eq, %7, %98 : vector<1x4xi32>
    %100 = vector.broadcast %92 : i32 to vector<1x4xi32>
    %101 = arith.select %99, %100, %76 : vector<1x4xi1>, vector<1x4xi32>
    %102 = vector.broadcast %92 : i32 to vector<1x16xi32>
    %103 = arith.cmpi eq, %6, %102 : vector<1x16xi32>
    %cst_28 = arith.constant 0xFF800000 : f32
    %104 = vector.broadcast %cst_28 : f32 to vector<1x16xf32>
    %105 = arith.select %103, %104, %80 : vector<1x16xi1>, vector<1x16xf32>
    %106 = vector.shape_cast %105 : vector<1x16xf32> to vector<1x1x16xf32>
    %cst_29 = arith.constant dense<0xFF800000> : vector<1xf32>
    %107 = vector.multi_reduction <maximumf>, %106, %cst_29 [1, 2] : vector<1x1x16xf32> to vector<1xf32>
    %108 = vector.shape_cast %107 : vector<1xf32> to vector<1x1x1xf32>
    %109 = vector.extract %108[0, 0, 0] : f32 from vector<1x1x1xf32>
    %110 = vector.broadcast %109 : f32 to vector<1x16xf32>
    %111 = arith.cmpf oeq, %105, %110 : vector<1x16xf32>
    %c16_i32_30 = arith.constant 16 : i32
    %112 = vector.broadcast %c16_i32_30 : i32 to vector<1x16xi32>
    %113 = arith.select %111, %6, %112 : vector<1x16xi1>, vector<1x16xi32>
    %114 = vector.shape_cast %113 : vector<1x16xi32> to vector<1x1x16xi32>
    %cst_31 = arith.constant dense<2147483647> : vector<1xi32>
    %115 = vector.multi_reduction <minsi>, %114, %cst_31 [1, 2] : vector<1x1x16xi32> to vector<1xi32>
    %116 = vector.shape_cast %115 : vector<1xi32> to vector<1x1x1xi32>
    %117 = vector.extract %116[0, 0, 0] : i32 from vector<1x1x1xi32>
    %118 = vector.broadcast %117 : i32 to vector<1x16xi32>
    %119 = arith.cmpi eq, %6, %118 : vector<1x16xi32>
    %120 = arith.extui %119 : vector<1x16xi1> to vector<1x16xi32>
    %121 = arith.sitofp %120 : vector<1x16xi32> to vector<1x16xf32>
    %c3 = arith.constant 3 : index
    %c0_32 = arith.constant 0 : index
    %122 = vector.load %arg6[%c3, %c0_32] : memref<4x16xf32, #tpu.memory_space<vmem>>, vector<1x16xf32>
    tpu.vector_store %arg6[%c3, %c0_32], %121 {strides = array<i32>} : memref<4x16xf32, #tpu.memory_space<vmem>>, vector<1x16xf32>,
    %c3_i32 = arith.constant 3 : i32
    %123 = vector.broadcast %c3_i32 : i32 to vector<1x4xi32>
    %124 = arith.cmpi eq, %7, %123 : vector<1x4xi32>
    %125 = vector.broadcast %117 : i32 to vector<1x4xi32>
    %126 = arith.select %124, %125, %101 : vector<1x4xi1>, vector<1x4xi32>
    %c0_33 = arith.constant 0 : index
    %c0_34 = arith.constant 0 : index
    %127 = vector.load %arg6[%c0_33, %c0_34] : memref<4x16xf32, #tpu.memory_space<vmem>>, vector<4x16xf32>
    %cst_35 = arith.constant dense<0.000000e+00> : vector<4x32xf32>
    %128 = tpu.matmul %127, %0, %cst_35 {dimension_numbers = #tpu.dot_dimension_numbers<[1], [0], [0], [1], [0, 0, 1, 1], [], []>} : vector<4x16xf32>, vector<16x32xf32>, vector<4x32xf32> -> vector<4x32xf32>
    %c0_36 = arith.constant 0 : index
    %c0_37 = arith.constant 0 : index
    %c0_38 = arith.constant 0 : index
    %129 = vector.load %arg4[%c0_36, %c0_37, %c0_38] : memref<1x4x32xf32, #tpu.memory_space<vmem>>, vector<1x4x32xf32>
    %130 = vector.shape_cast %129 : vector<1x4x32xf32> to vector<4x32xf32>
    %131 = vector.shape_cast %128 : vector<4x32xf32> to vector<1x4x32xf32>
    tpu.vector_store %arg4[%c0_36, %c0_37, %c0_38], %131 {strides = array<i32>} : memref<1x4x32xf32, #tpu.memory_space<vmem>>, vector<1x4x32xf32>,
    %c0_39 = arith.constant 0 : index
    %c0_40 = arith.constant 0 : index
    %c0_41 = arith.constant 0 : index
    %132 = vector.load %arg5[%c0_39, %c0_40, %c0_41] : memref<1x1x4xi32, #tpu.memory_space<vmem>>, vector<1x1x4xi32>
    %133 = vector.shape_cast %132 : vector<1x1x4xi32> to vector<1x4xi32>
    %134 = vector.shape_cast %126 : vector<1x4xi32> to vector<1x1x4xi32>
    tpu.vector_store %arg5[%c0_39, %c0_40, %c0_41], %134 {strides = array<i32>} : memref<1x1x4xi32, #tpu.memory_space<vmem>>, vector<1x1x4xi32>,
    return
  }
  func.func @transform_0(%arg0: i32) -> (i32, i32) {
    %c0_i32 = arith.constant 0 : i32
    %c0_i32_0 = arith.constant 0 : i32
    return %arg0, %c0_i32 : i32, i32
  }
  func.func @transform_1(%arg0: i32) -> (i32, i32) {
    %c0_i32 = arith.constant 0 : i32
    %c0_i32_0 = arith.constant 0 : i32
    %c0_i32_1 = arith.constant 0 : i32
    return %c0_i32, %c0_i32_0 : i32, i32
  }
  func.func @transform_2(%arg0: i32) -> (i32, i32) {
    %c0_i32 = arith.constant 0 : i32
    %c0_i32_0 = arith.constant 0 : i32
    %c0_i32_1 = arith.constant 0 : i32
    return %c0_i32, %c0_i32_0 : i32, i32
  }
  func.func @transform_3(%arg0: i32) -> (i32, i32, i32) {
    %c0_i32 = arith.constant 0 : i32
    %c0_i32_0 = arith.constant 0 : i32
    %c0_i32_1 = arith.constant 0 : i32
    return %arg0, %c0_i32, %c0_i32_0 : i32, i32, i32
  }
  func.func @transform_4(%arg0: i32) -> (i32, i32, i32) {
    %c0_i32 = arith.constant 0 : i32
    %c0_i32_0 = arith.constant 0 : i32
    %c0_i32_1 = arith.constant 0 : i32
    return %arg0, %c0_i32, %c0_i32_0 : i32, i32, i32
  }
}

module attributes {stable_mosaic.version = 11 : i64} {
  func.func @_cw_attn_kernel(%arg0: i32, %arg1: memref<16x32xf32, #tpu.memory_space<vmem>>, %arg2: memref<32x256xf32, #tpu.memory_space<vmem>>, %arg3: memref<1x256xf32, #tpu.memory_space<vmem>>, %arg4: memref<1x4x32xf32, #tpu.memory_space<vmem>>, %arg5: memref<1x1x4xi32, #tpu.memory_space<vmem>>, %arg6: memref<4x16xf32, #tpu.memory_space<vmem>>) attributes {dimension_semantics = [#tpu.dimension_semantics<parallel>], iteration_bounds = array<i64: 2>, scalar_prefetch = 0 : i64, scratch_operands = 1 : i64, tpu.core_type = #tpu.core_type<tc>, window_params = [{transform_indices = @transform_0, window_bounds = array<i64: 16, 32>}, {pipeline_mode = #tpu.pipeline_mode<synchronous>, transform_indices = @transform_1, window_bounds = array<i64: 32, 256>}, {pipeline_mode = #tpu.pipeline_mode<synchronous>, transform_indices = @transform_2, window_bounds = array<i64: 1, 256>}, {transform_indices = @transform_3, window_bounds = array<i64: 1, 4, 32>}, {transform_indices = @transform_4, window_bounds = array<i64: 1, 1, 4>}]} {
    %c0 = arith.constant 0 : index
    %c0_0 = arith.constant 0 : index
    %0 = vector.load %arg1[%c0, %c0_0] : memref<16x32xf32, #tpu.memory_space<vmem>>, vector<16x32xf32>
    %c0_1 = arith.constant 0 : index
    %c0_2 = arith.constant 0 : index
    %1 = vector.load %arg2[%c0_1, %c0_2] : memref<32x256xf32, #tpu.memory_space<vmem>>, vector<32x256xf32>
    %cst = arith.constant dense<0.000000e+00> : vector<16x256xf32>
    %2 = tpu.matmul %0, %1, %cst {dimension_numbers = #tpu.dot_dimension_numbers<[1], [0], [0], [1], [0, 0, 1, 1], [], []>} : vector<16x32xf32>, vector<32x256xf32>, vector<16x256xf32> -> vector<16x256xf32>
    %c0_3 = arith.constant 0 : index
    %c0_4 = arith.constant 0 : index
    %3 = vector.load %arg3[%c0_3, %c0_4] : memref<1x256xf32, #tpu.memory_space<vmem>>, vector<1x256xf32>
    %4 = vector.broadcast %3 : vector<1x256xf32> to vector<16x256xf32>
    %5 = arith.addf %2, %4 : vector<16x256xf32>
    %6 = tpu.iota {dimensions = array<i32: 1>} : vector<1x16xi32>
    %7 = tpu.iota {dimensions = array<i32: 1>} : vector<1x4xi32>
    %8 = vector.extract_strided_slice %5 {offsets = [0, 0], sizes = [16, 128], strides = [1, 1]} : vector<16x256xf32> to vector<16x128xf32>
    %9 = vector.extract_strided_slice %5 {offsets = [0, 128], sizes = [16, 128], strides = [1, 1]} : vector<16x256xf32> to vector<16x128xf32>
    %cst_5 = arith.constant 0.000000e+00 : f32
    %10 = vector.broadcast %cst_5 : f32 to vector<1x16xf32>
    %cst_6 = arith.constant dense<0.000000e+00> : vector<16x16xf32>
    %11 = tpu.matmul %8, %9, %cst_6 {dimension_numbers = #tpu.dot_dimension_numbers<[1], [1], [0], [0], [0, 0, 1, 0], [], []>} : vector<16x128xf32>, vector<16x128xf32>, vector<16x16xf32> -> vector<16x16xf32>
    %cst_7 = arith.constant 1.000000e+00 : f32
    %12 = vector.broadcast %cst_7 : f32 to vector<16x16xf32>
    %13 = arith.mulf %11, %12 : vector<16x16xf32>
    %cst_8 = arith.constant dense<0xFF800000> : vector<16xf32>
    %14 = vector.multi_reduction <maximumf>, %13, %cst_8 [1] : vector<16x16xf32> to vector<16xf32>
    %15 = vector.shape_cast %14 : vector<16xf32> to vector<16x1xf32>
    %16 = vector.broadcast %15 : vector<16x1xf32> to vector<16x16xf32>
    %17 = arith.subf %13, %16 : vector<16x16xf32>
    %18 = math.exp %17 : vector<16x16xf32>
    %cst_9 = arith.constant dense<0.000000e+00> : vector<16xf32>
    %19 = vector.multi_reduction <add>, %18, %cst_9 [1] : vector<16x16xf32> to vector<16xf32>
    %20 = vector.shape_cast %19 : vector<16xf32> to vector<16x1xf32>
    %cst_10 = arith.constant 1.000000e+00 : f32
    %21 = vector.broadcast %cst_10 : f32 to vector<16x1xf32>
    %22 = arith.divf %21, %20 : vector<16x1xf32>
    %23 = vector.broadcast %22 : vector<16x1xf32> to vector<16x16xf32>
    %24 = arith.mulf %18, %23 : vector<16x16xf32>
    %cst_11 = arith.constant dense<0.000000e+00> : vector<16xf32>
    %25 = vector.multi_reduction <add>, %24, %cst_11 [0] : vector<16x16xf32> to vector<16xf32>
    %26 = vector.shape_cast %25 : vector<16xf32> to vector<1x16xf32>
    %27 = arith.addf %10, %26 : vector<1x16xf32>
    %cst_12 = arith.constant 6.250000e-02 : f32
    %28 = vector.broadcast %cst_12 : f32 to vector<1x16xf32>
    %29 = arith.mulf %27, %28 : vector<1x16xf32>
    %c0_i32 = arith.constant 0 : i32
    %30 = vector.broadcast %c0_i32 : i32 to vector<1x4xi32>
    %31 = vector.shape_cast %29 : vector<1x16xf32> to vector<1x1x16xf32>
    %cst_13 = arith.constant dense<0xFF800000> : vector<1xf32>
    %32 = vector.multi_reduction <maximumf>, %31, %cst_13 [1, 2] : vector<1x1x16xf32> to vector<1xf32>
    %33 = vector.shape_cast %32 : vector<1xf32> to vector<1x1x1xf32>
    %34 = vector.extract %33[0, 0, 0] : f32 from vector<1x1x1xf32>
    %35 = vector.broadcast %34 : f32 to vector<1x16xf32>
    %36 = arith.cmpf oeq, %29, %35 : vector<1x16xf32>
    %c16_i32 = arith.constant 16 : i32
    %37 = vector.broadcast %c16_i32 : i32 to vector<1x16xi32>
    %38 = arith.select %36, %6, %37 : vector<1x16xi1>, vector<1x16xi32>
    %39 = vector.shape_cast %38 : vector<1x16xi32> to vector<1x1x16xi32>
    %cst_14 = arith.constant dense<2147483647> : vector<1xi32>
    %40 = vector.multi_reduction <minsi>, %39, %cst_14 [1, 2] : vector<1x1x16xi32> to vector<1xi32>
    %41 = vector.shape_cast %40 : vector<1xi32> to vector<1x1x1xi32>
    %42 = vector.extract %41[0, 0, 0] : i32 from vector<1x1x1xi32>
    %43 = vector.broadcast %42 : i32 to vector<1x16xi32>
    %44 = arith.cmpi eq, %6, %43 : vector<1x16xi32>
    %45 = arith.extui %44 : vector<1x16xi1> to vector<1x16xi32>
    %46 = arith.sitofp %45 : vector<1x16xi32> to vector<1x16xf32>
    %c0_15 = arith.constant 0 : index
    %c0_16 = arith.constant 0 : index
    %47 = vector.load %arg6[%c0_15, %c0_16] : memref<4x16xf32, #tpu.memory_space<vmem>>, vector<1x16xf32>
    tpu.vector_store %arg6[%c0_15, %c0_16], %46 {strides = array<i32>} : memref<4x16xf32, #tpu.memory_space<vmem>>, vector<1x16xf32>,
    %c0_i32_17 = arith.constant 0 : i32
    %48 = vector.broadcast %c0_i32_17 : i32 to vector<1x4xi32>
    %49 = arith.cmpi eq, %7, %48 : vector<1x4xi32>
    %50 = vector.broadcast %42 : i32 to vector<1x4xi32>
    %51 = arith.select %49, %50, %30 : vector<1x4xi1>, vector<1x4xi32>
    %52 = vector.broadcast %42 : i32 to vector<1x16xi32>
    %53 = arith.cmpi eq, %6, %52 : vector<1x16xi32>
    %cst_18 = arith.constant 0xFF800000 : f32
    %54 = vector.broadcast %cst_18 : f32 to vector<1x16xf32>
    %55 = arith.select %53, %54, %29 : vector<1x16xi1>, vector<1x16xf32>
    %56 = vector.shape_cast %55 : vector<1x16xf32> to vector<1x1x16xf32>
    %cst_19 = arith.constant dense<0xFF800000> : vector<1xf32>
    %57 = vector.multi_reduction <maximumf>, %56, %cst_19 [1, 2] : vector<1x1x16xf32> to vector<1xf32>
    %58 = vector.shape_cast %57 : vector<1xf32> to vector<1x1x1xf32>
    %59 = vector.extract %58[0, 0, 0] : f32 from vector<1x1x1xf32>
    %60 = vector.broadcast %59 : f32 to vector<1x16xf32>
    %61 = arith.cmpf oeq, %55, %60 : vector<1x16xf32>
    %c16_i32_20 = arith.constant 16 : i32
    %62 = vector.broadcast %c16_i32_20 : i32 to vector<1x16xi32>
    %63 = arith.select %61, %6, %62 : vector<1x16xi1>, vector<1x16xi32>
    %64 = vector.shape_cast %63 : vector<1x16xi32> to vector<1x1x16xi32>
    %cst_21 = arith.constant dense<2147483647> : vector<1xi32>
    %65 = vector.multi_reduction <minsi>, %64, %cst_21 [1, 2] : vector<1x1x16xi32> to vector<1xi32>
    %66 = vector.shape_cast %65 : vector<1xi32> to vector<1x1x1xi32>
    %67 = vector.extract %66[0, 0, 0] : i32 from vector<1x1x1xi32>
    %68 = vector.broadcast %67 : i32 to vector<1x16xi32>
    %69 = arith.cmpi eq, %6, %68 : vector<1x16xi32>
    %70 = arith.extui %69 : vector<1x16xi1> to vector<1x16xi32>
    %71 = arith.sitofp %70 : vector<1x16xi32> to vector<1x16xf32>
    %c1 = arith.constant 1 : index
    %c0_22 = arith.constant 0 : index
    %72 = vector.load %arg6[%c1, %c0_22] : memref<4x16xf32, #tpu.memory_space<vmem>>, vector<1x16xf32>
    tpu.vector_store %arg6[%c1, %c0_22], %71 {strides = array<i32>} : memref<4x16xf32, #tpu.memory_space<vmem>>, vector<1x16xf32>,
    %c1_i32 = arith.constant 1 : i32
    %73 = vector.broadcast %c1_i32 : i32 to vector<1x4xi32>
    %74 = arith.cmpi eq, %7, %73 : vector<1x4xi32>
    %75 = vector.broadcast %67 : i32 to vector<1x4xi32>
    %76 = arith.select %74, %75, %51 : vector<1x4xi1>, vector<1x4xi32>
    %77 = vector.broadcast %67 : i32 to vector<1x16xi32>
    %78 = arith.cmpi eq, %6, %77 : vector<1x16xi32>
    %cst_23 = arith.constant 0xFF800000 : f32
    %79 = vector.broadcast %cst_23 : f32 to vector<1x16xf32>
    %80 = arith.select %78, %79, %55 : vector<1x16xi1>, vector<1x16xf32>
    %81 = vector.shape_cast %80 : vector<1x16xf32> to vector<1x1x16xf32>
    %cst_24 = arith.constant dense<0xFF800000> : vector<1xf32>
    %82 = vector.multi_reduction <maximumf>, %81, %cst_24 [1, 2] : vector<1x1x16xf32> to vector<1xf32>
    %83 = vector.shape_cast %82 : vector<1xf32> to vector<1x1x1xf32>
    %84 = vector.extract %83[0, 0, 0] : f32 from vector<1x1x1xf32>
    %85 = vector.broadcast %84 : f32 to vector<1x16xf32>
    %86 = arith.cmpf oeq, %80, %85 : vector<1x16xf32>
    %c16_i32_25 = arith.constant 16 : i32
    %87 = vector.broadcast %c16_i32_25 : i32 to vector<1x16xi32>
    %88 = arith.select %86, %6, %87 : vector<1x16xi1>, vector<1x16xi32>
    %89 = vector.shape_cast %88 : vector<1x16xi32> to vector<1x1x16xi32>
    %cst_26 = arith.constant dense<2147483647> : vector<1xi32>
    %90 = vector.multi_reduction <minsi>, %89, %cst_26 [1, 2] : vector<1x1x16xi32> to vector<1xi32>
    %91 = vector.shape_cast %90 : vector<1xi32> to vector<1x1x1xi32>
    %92 = vector.extract %91[0, 0, 0] : i32 from vector<1x1x1xi32>
    %93 = vector.broadcast %92 : i32 to vector<1x16xi32>
    %94 = arith.cmpi eq, %6, %93 : vector<1x16xi32>
    %95 = arith.extui %94 : vector<1x16xi1> to vector<1x16xi32>
    %96 = arith.sitofp %95 : vector<1x16xi32> to vector<1x16xf32>
    %c2 = arith.constant 2 : index
    %c0_27 = arith.constant 0 : index
    %97 = vector.load %arg6[%c2, %c0_27] : memref<4x16xf32, #tpu.memory_space<vmem>>, vector<1x16xf32>
    tpu.vector_store %arg6[%c2, %c0_27], %96 {strides = array<i32>} : memref<4x16xf32, #tpu.memory_space<vmem>>, vector<1x16xf32>,
    %c2_i32 = arith.constant 2 : i32
    %98 = vector.broadcast %c2_i32 : i32 to vector<1x4xi32>
    %99 = arith.cmpi eq, %7, %98 : vector<1x4xi32>
    %100 = vector.broadcast %92 : i32 to vector<1x4xi32>
    %101 = arith.select %99, %100, %76 : vector<1x4xi1>, vector<1x4xi32>
    %102 = vector.broadcast %92 : i32 to vector<1x16xi32>
    %103 = arith.cmpi eq, %6, %102 : vector<1x16xi32>
    %cst_28 = arith.constant 0xFF800000 : f32
    %104 = vector.broadcast %cst_28 : f32 to vector<1x16xf32>
    %105 = arith.select %103, %104, %80 : vector<1x16xi1>, vector<1x16xf32>
    %106 = vector.shape_cast %105 : vector<1x16xf32> to vector<1x1x16xf32>
    %cst_29 = arith.constant dense<0xFF800000> : vector<1xf32>
    %107 = vector.multi_reduction <maximumf>, %106, %cst_29 [1, 2] : vector<1x1x16xf32> to vector<1xf32>
    %108 = vector.shape_cast %107 : vector<1xf32> to vector<1x1x1xf32>
    %109 = vector.extract %108[0, 0, 0] : f32 from vector<1x1x1xf32>
    %110 = vector.broadcast %109 : f32 to vector<1x16xf32>
    %111 = arith.cmpf oeq, %105, %110 : vector<1x16xf32>
    %c16_i32_30 = arith.constant 16 : i32
    %112 = vector.broadcast %c16_i32_30 : i32 to vector<1x16xi32>
    %113 = arith.select %111, %6, %112 : vector<1x16xi1>, vector<1x16xi32>
    %114 = vector.shape_cast %113 : vector<1x16xi32> to vector<1x1x16xi32>
    %cst_31 = arith.constant dense<2147483647> : vector<1xi32>
    %115 = vector.multi_reduction <minsi>, %114, %cst_31 [1, 2] : vector<1x1x16xi32> to vector<1xi32>
    %116 = vector.shape_cast %115 : vector<1xi32> to vector<1x1x1xi32>
    %117 = vector.extract %116[0, 0, 0] : i32 from vector<1x1x1xi32>
    %118 = vector.broadcast %117 : i32 to vector<1x16xi32>
    %119 = arith.cmpi eq, %6, %118 : vector<1x16xi32>
    %120 = arith.extui %119 : vector<1x16xi1> to vector<1x16xi32>
    %121 = arith.sitofp %120 : vector<1x16xi32> to vector<1x16xf32>
    %c3 = arith.constant 3 : index
    %c0_32 = arith.constant 0 : index
    %122 = vector.load %arg6[%c3, %c0_32] : memref<4x16xf32, #tpu.memory_space<vmem>>, vector<1x16xf32>
    tpu.vector_store %arg6[%c3, %c0_32], %121 {strides = array<i32>} : memref<4x16xf32, #tpu.memory_space<vmem>>, vector<1x16xf32>,
    %c3_i32 = arith.constant 3 : i32
    %123 = vector.broadcast %c3_i32 : i32 to vector<1x4xi32>
    %124 = arith.cmpi eq, %7, %123 : vector<1x4xi32>
    %125 = vector.broadcast %117 : i32 to vector<1x4xi32>
    %126 = arith.select %124, %125, %101 : vector<1x4xi1>, vector<1x4xi32>
    %c0_33 = arith.constant 0 : index
    %c0_34 = arith.constant 0 : index
    %127 = vector.load %arg6[%c0_33, %c0_34] : memref<4x16xf32, #tpu.memory_space<vmem>>, vector<4x16xf32>
    %cst_35 = arith.constant dense<0.000000e+00> : vector<4x32xf32>
    %128 = tpu.matmul %127, %0, %cst_35 {dimension_numbers = #tpu.dot_dimension_numbers<[1], [0], [0], [1], [0, 0, 1, 1], [], []>} : vector<4x16xf32>, vector<16x32xf32>, vector<4x32xf32> -> vector<4x32xf32>
    %c0_36 = arith.constant 0 : index
    %c0_37 = arith.constant 0 : index
    %c0_38 = arith.constant 0 : index
    %129 = vector.load %arg4[%c0_36, %c0_37, %c0_38] : memref<1x4x32xf32, #tpu.memory_space<vmem>>, vector<1x4x32xf32>
    %130 = vector.shape_cast %129 : vector<1x4x32xf32> to vector<4x32xf32>
    %131 = vector.shape_cast %128 : vector<4x32xf32> to vector<1x4x32xf32>
    tpu.vector_store %arg4[%c0_36, %c0_37, %c0_38], %131 {strides = array<i32>} : memref<1x4x32xf32, #tpu.memory_space<vmem>>, vector<1x4x32xf32>,
    %c0_39 = arith.constant 0 : index
    %c0_40 = arith.constant 0 : index
    %c0_41 = arith.constant 0 : index
    %132 = vector.load %arg5[%c0_39, %c0_40, %c0_41] : memref<1x1x4xi32, #tpu.memory_space<vmem>>, vector<1x1x4xi32>
    %133 = vector.shape_cast %132 : vector<1x1x4xi32> to vector<1x4xi32>
    %134 = vector.shape_cast %126 : vector<1x4xi32> to vector<1x1x4xi32>
    tpu.vector_store %arg5[%c0_39, %c0_40, %c0_41], %134 {strides = array<i32>} : memref<1x1x4xi32, #tpu.memory_space<vmem>>, vector<1x1x4xi32>,
    return
  }
  func.func @transform_0(%arg0: i32) -> (i32, i32) {
    %c0_i32 = arith.constant 0 : i32
    %c0_i32_0 = arith.constant 0 : i32
    return %arg0, %c0_i32 : i32, i32
  }
  func.func @transform_1(%arg0: i32) -> (i32, i32) {
    %c0_i32 = arith.constant 0 : i32
    %c0_i32_0 = arith.constant 0 : i32
    %c0_i32_1 = arith.constant 0 : i32
    return %c0_i32, %c0_i32_0 : i32, i32
  }
  func.func @transform_2(%arg0: i32) -> (i32, i32) {
    %c0_i32 = arith.constant 0 : i32
    %c0_i32_0 = arith.constant 0 : i32
    %c0_i32_1 = arith.constant 0 : i32
    return %c0_i32, %c0_i32_0 : i32, i32
  }
  func.func @transform_3(%arg0: i32) -> (i32, i32, i32) {
    %c0_i32 = arith.constant 0 : i32
    %c0_i32_0 = arith.constant 0 : i32
    %c0_i32_1 = arith.constant 0 : i32
    return %arg0, %c0_i32, %c0_i32_0 : i32, i32, i32
  }
  func.func @transform_4(%arg0: i32) -> (i32, i32, i32) {
    %c0_i32 = arith.constant 0 : i32
    %c0_i32_0 = arith.constant 0 : i32
    %c0_i32_1 = arith.constant 0 : i32
    return %arg0, %c0_i32, %c0_i32_0 : i32, i32, i32
  }
}

</mosaic_0001>

<llo_original>
// kernel: tpu_custom_call.1
$region0: #{tpu_custom_call.1}
  #allocation0 [shape = 'u32[]', space=smem, size = 0x4, offset = 0x4, fixed_abs, tag = 'smem constant byte address 0x4 - core index']
  #allocation1 [shape = 'u32[144,128]{1,0:T(1,128)}', space=vmem, size = 0x12000, scoped, tag = 'internal scratch']
  #allocation2 [shape = 'f32[4,16]{1,0:T(4,128)}', space=vmem, size = 0x800, scoped, tag = 'scratch operand']
  %s0 = inlined_call_operand.hbm [shape: f32[32,32], index: 0, kind: input, shape index: {}]
  %s1 = inlined_call_operand.hbm [shape: f32[32,256], index: 1, kind: input, shape index: {}]
  %s2 = inlined_call_operand.vmem [shape: f32[1,256], index: 2, kind: input, shape index: {}]
  %s3 = inlined_call_operand.hbm [shape: f32[2,4,32], index: 3, kind: output, shape index: {0}]
  %s4 = inlined_call_operand.hbm [shape: s32[2,1,4], index: 4, kind: output, shape index: {1}]
  %5 = xla_tuple %s3, %s4
  %s6 = sld [smem:[#allocation0]]
  $region61: #{tpu_custom_call.1} parent=0
    _
  %s8 = ssub.s32 1, %s6
  %s9 = scalar_select 0, %s8, %s6
  $region1: #{tpu_custom_call.1} parent=0
    #allocation3 [shape = 'u8[16384]{0}', space=vmem, size = 0x4000, scoped, tag = 'input window, operand 0']
    #allocation4 [shape = 's32[2]{0}', space=sflag, size = 0x8, scoped, tag = 'scoped memory for tpu_custom_call.1']
    #allocation5 [shape = 's32[2]{0}', space=sflag, size = 0x8, scoped, tag = 'scoped memory for tpu_custom_call.1']
    #allocation6 [shape = 'u8[32768]{0}', space=vmem, size = 0x8000, scoped, tag = 'input window, operand 1, single buffered']
    #allocation7 [shape = 's32[1]{0}', space=sflag, size = 0x4, scoped, tag = 'scoped memory for tpu_custom_call.1']
    #allocation8 [shape = 'u8[4096]{0}', space=vmem, size = 0x1000, scoped, tag = 'output window, operand 0']
    #allocation9 [shape = 'u8[1024]{0}', space=vmem, size = 0x400, scoped, tag = 'output window, operand 1']
    #allocation10 [shape = 's32[2]{0}', space=sflag, size = 0x8, scoped, tag = 'scoped memory for tpu_custom_call.1']
    %10 = vsyncpa [#allocation4], 0
    %s11 = scalar_lea.sflag [#allocation4], 1
    %12 = vsyncpa %s11, 0
    %13 = vsyncpa [#allocation7], 0
    %14 = vsyncpa [#allocation5], 0
    %s15 = scalar_lea.sflag [#allocation5], 1
    %16 = vsyncpa %s15, 0
    %17 = vsyncpa [#allocation10], 0
    %s18 = scalar_lea.sflag [#allocation10], 1
    %19 = vsyncpa %s18, 0
    loop: start=0, step=1, limit=4
    $region2: #{tpu_custom_call.1} parent=1 // loop_pre_header
      _
    $region3: #{tpu_custom_call.1} parent=1 // loop_header
      %s21 = sphi 0, %s25
      %p22 = scmp.ge.s32.totalorder %s21, 4
      %s31 = sphi 0, %s33
      %s34 = sphi 0, %s31
      %s35 = sphi 0, %s34
      %s51 = sphi 0, %s35
      %s55 = sphi 0, %s55
      %s57 = sphi 0, %s55
      %s58 = sphi 0, %s57
      %s72 = sphi 0, %s58
      %s76 = sphi 0, %s76
      %s78 = sphi 0, %s76
      %s79 = sphi 0, %s78
      %s93 = sphi 0, %s79
      %s99 = sphi 0, %s101
      %s102 = sphi 0, %s99
      %s103 = sphi 0, %s102
      %s119 = sphi 0, %s103
      %s125 = sphi 0, %s127
      %s128 = sphi 0, %s125
      %s129 = sphi 0, %s128
      %s145 = sphi 0, %s129
    $region4: #{tpu_custom_call.1} parent=1 // loop_header_branch
      %24 = sbr.rel (%p22) target = $region8
    $region5: #{tpu_custom_call.1} parent=1 // loop_body
      %s26 = ssub.s32 %s21, 1
      %s27 = ssub.s32 %s21, 2
      %s28 = sadd.s32 %s21, 1
      %s29 = ssub.s32 %s21, %s28
      %p30 = scmp.eq.s32.totalorder %s29, 0
      %s32 = sadd.s32 %s31, 1
      %s33 = scalar_select %p30, %s31, %s32
      %p36 = pneg %p30
      %p37 = scmp.eq.s32.totalorder %s21, 1
      %p38 = por %p36, %p37
      %p39 = scmp.ne.s32.totalorder %s31, %s34
      %p40 = scmp.eq.s32.totalorder %s21, 0
      %p41 = por %p39, %p40
      %p42 = scmp.ne.s32.totalorder %s31, %s34
      %p43 = scmp.eq.s32.totalorder %s26, 1
      %p44 = por %p42, %p43
      %p45 = scmp.ne.s32.totalorder %s34, %s35
      %p46 = scmp.eq.s32.totalorder %s26, 0
      %p47 = por %p45, %p46
      %p48 = scmp.ne.s32.totalorder %s34, %s35
      %p49 = scmp.eq.s32.totalorder %s27, 1
      %p50 = por %p48, %p49
      %p52 = scmp.ne.s32.totalorder %s35, %s51
      %p53 = scmp.eq.s32.totalorder %s27, 0
      %p54 = por %p52, %p53
      %s56 = sadd.s32 %s55, 1
      %p59 = scmp.eq.s32.totalorder %s21, 1
      %p60 = scmp.ne.s32.totalorder %s55, %s57
      %p61 = scmp.eq.s32.totalorder %s21, 0
      %p62 = por %p60, %p61
      %p63 = scmp.ne.s32.totalorder %s55, %s57
      %p64 = scmp.eq.s32.totalorder %s26, 1
      %p65 = por %p63, %p64
      %p66 = scmp.ne.s32.totalorder %s57, %s58
      %p67 = scmp.eq.s32.totalorder %s26, 0
      %p68 = por %p66, %p67
      %p69 = scmp.ne.s32.totalorder %s57, %s58
      %p70 = scmp.eq.s32.totalorder %s27, 1
      %p71 = por %p69, %p70
      %p73 = scmp.ne.s32.totalorder %s58, %s72
      %p74 = scmp.eq.s32.totalorder %s27, 0
      %p75 = por %p73, %p74
      %s77 = sadd.s32 %s76, 1
      %p80 = scmp.eq.s32.totalorder %s21, 1
      %p81 = scmp.ne.s32.totalorder %s76, %s78
      %p82 = scmp.eq.s32.totalorder %s21, 0
      %p83 = por %p81, %p82
      %p84 = scmp.ne.s32.totalorder %s76, %s78
      %p85 = scmp.eq.s32.totalorder %s26, 1
      %p86 = por %p84, %p85
      %p87 = scmp.ne.s32.totalorder %s78, %s79
      %p88 = scmp.eq.s32.totalorder %s26, 0
      %p89 = por %p87, %p88
      %p90 = scmp.ne.s32.totalorder %s78, %s79
      %p91 = scmp.eq.s32.totalorder %s27, 1
      %p92 = por %p90, %p91
      %p94 = scmp.ne.s32.totalorder %s79, %s93
      %p95 = scmp.eq.s32.totalorder %s27, 0
      %p96 = por %p94, %p95
      %s97 = ssub.s32 %s21, %s28
      %p98 = scmp.eq.s32.totalorder %s97, 0
      %s100 = sadd.s32 %s99, 1
      %s101 = scalar_select %p98, %s99, %s100
      %p104 = pneg %p98
      %p105 = scmp.eq.s32.totalorder %s21, 1
      %p106 = por %p104, %p105
      %p107 = scmp.ne.s32.totalorder %s99, %s102
      %p108 = scmp.eq.s32.totalorder %s21, 0
      %p109 = por %p107, %p108
      %p110 = scmp.ne.s32.totalorder %s99, %s102
      %p111 = scmp.eq.s32.totalorder %s26, 1
      %p112 = por %p110, %p111
      %p113 = scmp.ne.s32.totalorder %s102, %s103
      %p114 = scmp.eq.s32.totalorder %s26, 0
      %p115 = por %p113, %p114
      %p116 = scmp.ne.s32.totalorder %s102, %s103
      %p117 = scmp.eq.s32.totalorder %s27, 1
      %p118 = por %p116, %p117
      %p120 = scmp.ne.s32.totalorder %s103, %s119
      %p121 = scmp.eq.s32.totalorder %s27, 0
      %p122 = por %p120, %p121
      %s123 = ssub.s32 %s21, %s28
      %p124 = scmp.eq.s32.totalorder %s123, 0
      %s126 = sadd.s32 %s125, 1
      %s127 = scalar_select %p124, %s125, %s126
      %p130 = pneg %p124
      %p131 = scmp.eq.s32.totalorder %s21, 1
      %p132 = por %p130, %p131
      %p133 = scmp.ne.s32.totalorder %s125, %s128
      %p134 = scmp.eq.s32.totalorder %s21, 0
      %p135 = por %p133, %p134
      %p136 = scmp.ne.s32.totalorder %s125, %s128
      %p137 = scmp.eq.s32.totalorder %s26, 1
      %p138 = por %p136, %p137
      %p139 = scmp.ne.s32.totalorder %s128, %s129
      %p140 = scmp.eq.s32.totalorder %s26, 0
      %p141 = por %p139, %p140
      %p142 = scmp.ne.s32.totalorder %s128, %s129
      %p143 = scmp.eq.s32.totalorder %s27, 1
      %p144 = por %p142, %p143
      %p146 = scmp.ne.s32.totalorder %s129, %s145
      %p147 = scmp.eq.s32.totalorder %s27, 0
      %p148 = por %p146, %p147
      %p149 = scmp.le.s32.totalorder 1, %s21
      %p150 = scmp.lt.s32.totalorder %s21, 3
      %p151 = pnand %p149, %p150
      %p152 = pneg %p151
      // Predicated region
      $region9: #{tpu_custom_call.1} parent=5 // pred_check
        _
      $region10: #{tpu_custom_call.1} parent=5 // pred_check_branch
        %154 = sbr.rel (%p151) target = $region12
      $region11: #{tpu_custom_call.1} parent=5 // pred_region
        %s155 = ssub.s32 %s21, 1
        // Predicated region
        $region13: #{tpu_custom_call.1} parent=11 // pred_check
          %p156 = pneg %p68
        $region14: #{tpu_custom_call.1} parent=11 // pred_check_branch
          %158 = sbr.rel (%p156) target = $region16
        $region15: #{tpu_custom_call.1} parent=11 // pred_region
          %s160 = ssub.s32 1024, 1024
          %161 = vsyncadd [#allocation7], %s160
          %s162 = sshll.u32 [#allocation6], 4
          %s163 = int_to_ptr.vmem [resolvable:$true] %s162
          %168 = dma.hbm_to_vmem [thread:$0]  %s1, 1024, %s163, [#allocation7], 256, 256, 16
        $region16: #{tpu_custom_call.1} parent=11 // pred_fallthru
          _
        // Predicated region
        $region17: #{tpu_custom_call.1} parent=11 // pred_check
          %p169 = pneg %p89
        $region18: #{tpu_custom_call.1} parent=11 // pred_check_branch
          %171 = sbr.rel (%p169) target = $region20
        $region19: #{tpu_custom_call.1} parent=11 // pred_region
          _
        $region20: #{tpu_custom_call.1} parent=11 // pred_fallthru
          _
      $region12: #{tpu_custom_call.1} parent=5 // pred_fallthru
        _
      %p172 = scmp.lt.s32.totalorder %s21, 2
      // Predicated region
      $region21: #{tpu_custom_call.1} parent=5 // pred_check
        %p173 = pneg %p172
      $region22: #{tpu_custom_call.1} parent=5 // pred_check_branch
        %175 = sbr.rel (%p173) target = $region24
      $region23: #{tpu_custom_call.1} parent=5 // pred_region
        // Predicated region
        $region25: #{tpu_custom_call.1} parent=23 // pred_check
          %p176 = pneg %p41
        $region26: #{tpu_custom_call.1} parent=23 // pred_check_branch
          %178 = sbr.rel (%p176) target = $region28
        $region27: #{tpu_custom_call.1} parent=23 // pred_region
          %s179 = sand.u32 %s31, 1
          %s180 = scalar_lea.sflag [#allocation4], %s179
          %s181 = sand.u32 %s31, 1
          %s182 = smul.addr %s181, 16
          %s183 = scalar_lea.vmem [#allocation3], %s182
          %s184 = smul.u32 2, %s21
          %s186 = ssub.s32 256, 256
          %187 = vsyncadd %s180, %s186
          %s188 = smul.addr %s184, 128
          %s189 = scalar_lea.hbm %s0, %s188
          %s190 = sshll.u32 %s183, 4
          %s191 = int_to_ptr.vmem [resolvable:$true] %s190
          %196 = dma.hbm_to_vmem [thread:$0]  %s189, 256, %s191, %s180, 128, 128, 8
        $region28: #{tpu_custom_call.1} parent=23 // pred_fallthru
          _
      $region24: #{tpu_custom_call.1} parent=5 // pred_fallthru
        _
      %p197 = scmp.le.s32.totalorder 1, %s21
      %p198 = scmp.lt.s32.totalorder %s21, 3
      %p199 = pnand %p197, %p198
      %p200 = pneg %p199
      // Predicated region
      $region29: #{tpu_custom_call.1} parent=5 // pred_check
        _
      $region30: #{tpu_custom_call.1} parent=5 // pred_check_branch
        %202 = sbr.rel (%p199) target = $region32
      $region31: #{tpu_custom_call.1} parent=5 // pred_region
        %s203 = ssub.s32 %s21, 1
        %s204 = sand.u32 %s34, 1
        %s205 = scalar_lea.sflag [#allocation4], %s204
        %s206 = sand.u32 %s34, 1
        %s207 = smul.addr %s206, 16
        %s208 = scalar_lea.vmem [#allocation3], %s207
        // Predicated region
        $region33: #{tpu_custom_call.1} parent=31 // pred_check
          %p209 = pneg %p47
        $region34: #{tpu_custom_call.1} parent=31 // pred_check_branch
          %211 = sbr.rel (%p209) target = $region36
        $region35: #{tpu_custom_call.1} parent=31 // pred_region
          %212 = dma.done %s205, 256
        $region36: #{tpu_custom_call.1} parent=31 // pred_fallthru
          _
        // Predicated region
        $region37: #{tpu_custom_call.1} parent=31 // pred_check
          %p213 = pneg %p68
        $region38: #{tpu_custom_call.1} parent=31 // pred_check_branch
          %215 = sbr.rel (%p213) target = $region40
        $region39: #{tpu_custom_call.1} parent=31 // pred_region
          %216 = dma.done [#allocation7], 1024
        $region40: #{tpu_custom_call.1} parent=31 // pred_fallthru
          _
        %s217 = sand.u32 %s34, 1
        %s218 = scalar_lea.sflag [#allocation4], %s217
        %s219 = sand.u32 %s34, 1
        %s220 = smul.addr %s219, 16
        %s221 = scalar_lea.vmem [#allocation3], %s220
        %p222 = pneg %p47
        %p223 = pneg %p44
        %p224 = pneg %p68
        %p225 = pneg %p65
        %p226 = pneg %p89
        %p227 = pneg %p86
        %p228 = pneg %p115
        %p229 = pneg %p112
        %s230 = sand.u32 %s102, 1
        %s231 = scalar_lea.sflag [#allocation5], %s230
        %s232 = sand.u32 %s102, 1
        %s233 = smul.addr %s232, 4
        %s234 = scalar_lea.vmem [#allocation8], %s233
        %p235 = pneg %p141
        %p236 = pneg %p138
        %s237 = sand.u32 %s128, 1
        %s238 = scalar_lea.sflag [#allocation10], %s237
        %s239 = sand.u32 %s128, 1
        %s240 = scalar_lea.vmem [#allocation9], %s239
        %s241 = smul.u32 2, %s26
        %v242 = vld [vmem:[%s208] sm:$0xff]
        %v243 = vld [vmem:[%s208 + $0x8] sm:$0xff]
        %v244 = vld [vmem:[#allocation6] sm:$0xff]
        %v245 = vld [vmem:[#allocation6 + $0x8] sm:$0xff]
        %v246 = vld [vmem:[#allocation6 + $0x10] sm:$0xff]
        %v247 = vld [vmem:[#allocation6 + $0x18] sm:$0xff]
        %v248 = vld [vmem:[#allocation6 + $0x20] sm:$0xff]
        %v249 = vld [vmem:[#allocation6 + $0x28] sm:$0xff]
        %v250 = vld [vmem:[#allocation6 + $0x30] sm:$0xff]
        %v251 = vld [vmem:[#allocation6 + $0x38] sm:$0xff]
        %v252 = vld [vmem:[%s2] sm:$0x3]
        %v254 = vlaneseq
        %v255 = vshrl.u32 %v254, 7
        %v256 = vsub.s32 0, %v255
        %v257 = vrot.slane %v252, %v256
        %v258 = vlaneseq
        %v259 = vshrl.u32 %v258, 7
        %v260 = vsub.s32 1, %v259
        %v261 = vrot.slane %v252, %v260
        %vm264 = vcmask 261120
        %v266 = vsel %vm264, %v242, 0
        %v269 = vsel %vm264, %v243, 0
        %271 = vmatprep.subr.mxu0 %v245
        %272 = vmatpush1.msra.mxu0 %v244
        %273 = vmatprep.subr.mxu0 %v247
        %274 = vmatpush1.msra.mxu0 %v246
        %275 = vmatprep.subr.mxu0 %v249
        %276 = vmatpush1.msra.mxu0 %v248
        %277 = vmatprep.subr.mxu0 %v251
        %278 = vmatpush1.msra.mxu0 %v250
        %279 = vmatprep.subr.mxu0 0.0
        %280 = vmatpush1.msra.mxu0 0.0
        %281 = vmatprep.subr.mxu0 0.0
        %282 = vmatpush1.msra.mxu0 0.0
        %283 = vmatprep.subr.mxu0 0.0
        %284 = vmatpush1.msra.mxu0 0.0
        %285 = vmatprep.subr.mxu0 0.0
        %286 = vmatpush1.msra.mxu0 0.0
        %287 = vmatprep.subr.mxu0 0.0
        %288 = vmatpush1.msra.mxu0 0.0
        %289 = vmatprep.subr.mxu0 0.0
        %290 = vmatpush1.msra.mxu0 0.0
        %291 = vmatprep.subr.mxu0 0.0
        %292 = vmatpush1.msra.mxu0 0.0
        %293 = vmatprep.subr.mxu0 0.0
        %294 = vmatpush1.msra.mxu0 0.0
        %295 = vmatprep.subr.mxu0 0.0
        %296 = vmatpush1.msra.mxu0 0.0
        %297 = vmatprep.subr.mxu0 0.0
        %298 = vmatpush1.msra.mxu0 0.0
        %299 = vmatprep.subr.mxu0 0.0
        %300 = vmatpush1.msra.mxu0 0.0
        %301 = vmatprep.subr.mxu0 0.0
        %302 = vmatpush1.msra.mxu0 0.0
        %303 = vmatprep.subr.mxu0 0.0
        %304 = vmatpush1.msra.mxu0 0.0
        %305 = vmatprep.subr.mxu0 0.0
        %306 = vmatpush1.msra.mxu0 0.0
        %307 = vmatprep.subr.mxu0 0.0
        %308 = vmatpush1.msra.mxu0 0.0
        %309 = vmatprep.subr.mxu0 0.0
        %310 = vmatpush1.msra.mxu0 0.0
        %311 = vmatprep.subr.mxu0 0.0
        %312 = vmatpush1.msra.mxu0 0.0
        %313 = vmatprep.subr.mxu0 0.0
        %314 = vmatpush1.msra.mxu0 0.0
        %315 = vmatprep.subr.mxu0 0.0
        %316 = vmatpush1.msra.mxu0 0.0
        %317 = vmatprep.subr.mxu0 0.0
        %318 = vmatpush1.msra.mxu0 0.0
        %319 = vmatprep.subr.mxu0 0.0
        %320 = vmatpush1.msra.mxu0 0.0
        %321 = vmatprep.subr.mxu0 0.0
        %322 = vmatpush1.msra.mxu0 0.0
        %323 = vmatprep.subr.mxu0 0.0
        %324 = vmatpush1.msra.mxu0 0.0
        %325 = vmatprep.subr.mxu0 0.0
        %326 = vmatpush1.msra.mxu0 0.0
        %327 = vmatprep.subr.mxu0 0.0
        %328 = vmatpush1.msra.mxu0 0.0
        %329 = vmatprep.subr.mxu0 0.0
        %330 = vmatpush1.msra.mxu0 0.0
        %331 = vmatprep.subr.mxu0 0.0
        %332 = vmatpush1.msra.mxu0 0.0
        %333 = vmatprep.subr.mxu0 0.0
        %334 = vmatpush1.msra.mxu0 0.0
        %335 = vmatprep.mubr.f32.mxu0 0.0
        %336 = vmatmul.mubr.f32.gmra.mrb[0].mxu0 %v266
        %v337 = vpop.f32.mrb[0].mxu0
        %v338 = vadd.f32 %v257, %v337
        %v339 = vpop.f32.mrb[0].mxu0
        %v340 = vadd.f32 %v261, %v339
        %341 = vmatprep.mubr.f32.mxu0 0.0
        %342 = vmatmul.mubr.f32.gmra.mrb[0].mxu0 %v269
        %v343 = vpop.f32.mrb[0].mxu0
        %v344 = vadd.f32 %v257, %v343
        %v345 = vpop.f32.mrb[0].mxu0
        %v346 = vadd.f32 %v261, %v345
        %347 = vdwg.mxu0
        %v348 = vlaneseq
        %v349 = vand.u32 %v348, 127
        %350 = vmatprep.subr.mxu0 0.0
        %351 = vmatpush1.xpose.msra.mxu0 %v340
        %352 = vmatprep.subr.mxu0 0.0
        %353 = vmatpush1.xpose.msra.mxu0 %v346
        %354 = vmatprep.subr.mxu0 0.0
        %355 = vmatpush1.xpose.msra.mxu0 0.0
        %356 = vmatprep.subr.mxu0 0.0
        %357 = vmatpush1.xpose.msra.mxu0 0.0
        %358 = vmatprep.subr.mxu0 0.0
        %359 = vmatpush1.xpose.msra.mxu0 0.0
        %360 = vmatprep.subr.mxu0 0.0
        %361 = vmatpush1.xpose.msra.mxu0 0.0
        %362 = vmatprep.subr.mxu0 0.0
        %363 = vmatpush1.xpose.msra.mxu0 0.0
        %364 = vmatprep.subr.mxu0 0.0
        %365 = vmatpush1.xpose.msra.mxu0 0.0
        %366 = vmatprep.subr.mxu0 0.0
        %367 = vmatpush1.xpose.msra.mxu0 0.0
        %368 = vmatprep.subr.mxu0 0.0
        %369 = vmatpush1.xpose.msra.mxu0 0.0
        %370 = vmatprep.subr.mxu0 0.0
        %371 = vmatpush1.xpose.msra.mxu0 0.0
        %372 = vmatprep.subr.mxu0 0.0
        %373 = vmatpush1.xpose.msra.mxu0 0.0
        %374 = vmatprep.subr.mxu0 0.0
        %375 = vmatpush1.xpose.msra.mxu0 0.0
        %376 = vmatprep.subr.mxu0 0.0
        %377 = vmatpush1.xpose.msra.mxu0 0.0
        %378 = vmatprep.subr.mxu0 0.0
        %379 = vmatpush1.xpose.msra.mxu0 0.0
        %380 = vmatprep.subr.mxu0 0.0
        %381 = vmatpush1.xpose.msra.mxu0 0.0
        %382 = vmatprep.subr.mxu0 0.0
        %383 = vmatpush1.xpose.msra.mxu0 0.0
        %384 = vmatprep.subr.mxu0 0.0
        %385 = vmatpush1.xpose.msra.mxu0 0.0
        %386 = vmatprep.subr.mxu0 0.0
        %387 = vmatpush1.xpose.msra.mxu0 0.0
        %388 = vmatprep.subr.mxu0 0.0
        %389 = vmatpush1.xpose.msra.mxu0 0.0
        %390 = vmatprep.subr.mxu0 0.0
        %391 = vmatpush1.xpose.msra.mxu0 0.0
        %392 = vmatprep.subr.mxu0 0.0
        %393 = vmatpush1.xpose.msra.mxu0 0.0
        %394 = vmatprep.subr.mxu0 0.0
        %395 = vmatpush1.xpose.msra.mxu0 0.0
        %396 = vmatprep.subr.mxu0 0.0
        %397 = vmatpush1.xpose.msra.mxu0 0.0
        %398 = vmatprep.subr.mxu0 0.0
        %399 = vmatpush1.xpose.msra.mxu0 0.0
        %400 = vmatprep.subr.mxu0 0.0
        %401 = vmatpush1.xpose.msra.mxu0 0.0
        %402 = vmatprep.subr.mxu0 0.0
        %403 = vmatpush1.xpose.msra.mxu0 0.0
        %404 = vmatprep.subr.mxu0 0.0
        %405 = vmatpush1.xpose.msra.mxu0 0.0
        %406 = vmatprep.subr.mxu0 0.0
        %407 = vmatpush1.xpose.msra.mxu0 0.0
        %408 = vmatprep.subr.mxu0 0.0
        %409 = vmatpush1.xpose.msra.mxu0 0.0
        %410 = vmatprep.subr.mxu0 0.0
        %411 = vmatpush1.xpose.msra.mxu0 0.0
        %412 = vmatprep.subr.mxu0 0.0
        %413 = vmatpush1.xpose.msra.mxu0 0.0
        %414 = vmatprep.mubr.f32.mxu0 0.0
        %415 = vmatmul.mubr.f32.gmra.mrb[0].mxu0 %v338
        %v416 = vpop.f32.mrb[0].mxu0
        %v417 = vadd.f32 0.0, %v416
        %v418 = vpop.f32.mrb[0].mxu0
        %419 = vmatprep.mubr.f32.mxu0 0.0
        %420 = vmatmul.mubr.f32.gmra.mrb[0].mxu0 %v344
        %v421 = vpop.f32.mrb[0].mxu0
        %v422 = vadd.f32 0.0, %v421
        %v423 = vpop.f32.mrb[0].mxu0
        %424 = vdwg.mxu0
        %vm425 = vcmask 130048
        %v426 = vsel %vm425, %v417, -inf
        %427 = vmax.xlane.f32.xlu0 %v426
        %v428 = vpop.xlane.xlu0 %427
        %v429 = vsel %vm425, %v422, -inf
        %430 = vmax.xlane.f32.xlu0 %v429
        %v431 = vpop.xlane.xlu0 %430
        %v432 = vsub.f32 %v417, %v428
        %v433 = vsub.f32 %v422, %v431
        %v434 = vmul.f32 %v432, 1.442695
        %v435 = vpow.pop %v434
        %v436 = vmul.f32 %v433, 1.442695
        %v437 = vpow.pop %v436
        %v438 = vsel %vm425, %v435, 0.0
        %439 = vadd.xlane.f32.xlu0 %v438
        %v440 = vpop.xlane.xlu0 %439
        %v441 = vsel %vm425, %v437, 0.0
        %442 = vadd.xlane.f32.xlu0 %v441
        %v443 = vpop.xlane.xlu0 %442
        %v444 = vrcp.pop %v440
        %v445 = vmul.f32 1.0, %v444
        %v446 = vrcp.pop %v443
        %v447 = vmul.f32 1.0, %v446
        %v448 = vmul.f32 %v435, %v445
        %v449 = vmul.f32 %v437, %v447
        %v450 = vsel %vm425, %v448, 0.0
        %v451 = vsel %vm425, %v449, 0.0
        %v452 = vadd.f32 %v450, %v451
        %v453 = vrot.slane %v452, 4
        %v454 = vadd.f32 %v452, %v453
        %v455 = vrot.slane %v454, 2
        %v456 = vadd.f32 %v454, %v455
        %v457 = vrot.slane %v456, 1
        %v458 = vadd.f32 %v456, %v457
        %v459 = vadd.f32 %v458, 0.0
        %v460 = vmul.f32 %v459, 0.0625
        %v461 = vsel %vm425, %v460, -inf
        %462 = vmax.xlane.f32.xlu0 %v461
        %v463 = vpop.xlane.xlu0 %462
        %s464 = vtos %v463
        %v465 = vstv %s464
        %vm466 = vcmp.eq.f32.partialorder %v460, %v465
        %v467 = vsel %vm466, %v349, 16
        %v468 = vsel %vm425, %v467, 2147483647
        %v469 = vand.u32 %v468, 65535
        %v470 = vshra.s32 %v468, 16
        %v471 = vcvt.s32.f32 %v469
        %v472 = vcvt.s32.f32 %v470
        %473 = vmin.xlane.f32.xlu0 %v472
        %v474 = vpop.xlane.xlu0 %473
        %vm475 = vcmp.eq.f32.partialorder %v472, %v474
        %v476 = vsel %vm475, %v471, inf
        %477 = vmin.xlane.f32.xlu0 %v476
        %v478 = vpop.xlane.xlu0 %477
        %v479 = vcvt.f32.s32 %v478
        %v480 = vcvt.f32.s32 %v474
        %v481 = vshll.u32 %v480, 16
        %v482 = vadd.s32 %v481, %v479
        %s483 = vtos %v482
        %v484 = vstv %s483
        %vm485 = vcmp.eq.s32.totalorder %v349, %v484
        %v486 = vsel %vm485, 1, 0
        %v487 = vcvt.s32.f32 %v486
        %vm488 = vcmask 122880
        %489 = vst.msk [vmem:[#allocation2] sm:$0x1] %vm488, %v487
        %vm490 = vcmp.eq.s32.totalorder %v349, 0
        %v491 = vsel %vm490, %v484, 0
        %v492 = vsel %vm485, -inf, %v460
        %v493 = vsel %vm425, %v492, -inf
        %494 = vmax.xlane.f32.xlu0 %v493
        %v495 = vpop.xlane.xlu0 %494
        %s496 = vtos %v495
        %v497 = vstv %s496
        %vm498 = vcmp.eq.f32.partialorder %v492, %v497
        %v499 = vsel %vm498, %v349, 16
        %v500 = vsel %vm425, %v499, 2147483647
        %v501 = vand.u32 %v500, 65535
        %v502 = vshra.s32 %v500, 16
        %v503 = vcvt.s32.f32 %v501
        %v504 = vcvt.s32.f32 %v502
        %505 = vmin.xlane.f32.xlu0 %v504
        %v506 = vpop.xlane.xlu0 %505
        %vm507 = vcmp.eq.f32.partialorder %v504, %v506
        %v508 = vsel %vm507, %v503, inf
        %509 = vmin.xlane.f32.xlu0 %v508
        %v510 = vpop.xlane.xlu0 %509
        %v511 = vcvt.f32.s32 %v510
        %v512 = vcvt.f32.s32 %v506
        %v513 = vshll.u32 %v512, 16
        %v514 = vadd.s32 %v513, %v511
        %s515 = vtos %v514
        %v516 = vstv %s515
        %vm517 = vcmp.eq.s32.totalorder %v349, %v516
        %v518 = vsel %vm517, 1, 0
        %v519 = vcvt.s32.f32 %v518
        %520 = vst.msk [vmem:[#allocation2 + $0x1] sm:$0x1] %vm488, %v519
        %vm521 = vcmp.eq.s32.totalorder %v349, 1
        %v522 = vsel %vm521, %v516, %v491
        %v523 = vsel %vm517, -inf, %v492
        %v524 = vsel %vm425, %v523, -inf
        %525 = vmax.xlane.f32.xlu0 %v524
        %v526 = vpop.xlane.xlu0 %525
        %s527 = vtos %v526
        %v528 = vstv %s527
        %vm529 = vcmp.eq.f32.partialorder %v523, %v528
        %v530 = vsel %vm529, %v349, 16
        %v531 = vsel %vm425, %v530, 2147483647
        %v532 = vand.u32 %v531, 65535
        %v533 = vshra.s32 %v531, 16
        %v534 = vcvt.s32.f32 %v532
        %v535 = vcvt.s32.f32 %v533
        %536 = vmin.xlane.f32.xlu0 %v535
        %v537 = vpop.xlane.xlu0 %536
        %vm538 = vcmp.eq.f32.partialorder %v535, %v537
        %v539 = vsel %vm538, %v534, inf
        %540 = vmin.xlane.f32.xlu0 %v539
        %v541 = vpop.xlane.xlu0 %540
        %v542 = vcvt.f32.s32 %v541
        %v543 = vcvt.f32.s32 %v537
        %v544 = vshll.u32 %v543, 16
        %v545 = vadd.s32 %v544, %v542
        %s546 = vtos %v545
        %v547 = vstv %s546
        %vm548 = vcmp.eq.s32.totalorder %v349, %v547
        %v549 = vsel %vm548, 1, 0
        %v550 = vcvt.s32.f32 %v549
        %551 = vst.msk [vmem:[#allocation2 + $0x2] sm:$0x1] %vm488, %v550
        %vm552 = vcmp.eq.s32.totalorder %v349, 2
        %v553 = vsel %vm552, %v547, %v522
        %v554 = vsel %vm548, -inf, %v523
        %v555 = vsel %vm425, %v554, -inf
        %556 = vmax.xlane.f32.xlu0 %v555
        %v557 = vpop.xlane.xlu0 %556
        %s558 = vtos %v557
        %v559 = vstv %s558
        %vm560 = vcmp.eq.f32.partialorder %v554, %v559
        %v561 = vsel %vm560, %v349, 16
        %v562 = vsel %vm425, %v561, 2147483647
        %v563 = vand.u32 %v562, 65535
        %v564 = vshra.s32 %v562, 16
        %v565 = vcvt.s32.f32 %v563
        %v566 = vcvt.s32.f32 %v564
        %567 = vmin.xlane.f32.xlu0 %v566
        %v568 = vpop.xlane.xlu0 %567
        %vm569 = vcmp.eq.f32.partialorder %v566, %v568
        %v570 = vsel %vm569, %v565, inf
        %571 = vmin.xlane.f32.xlu0 %v570
        %v572 = vpop.xlane.xlu0 %571
        %v573 = vcvt.f32.s32 %v572
        %v574 = vcvt.f32.s32 %v568
        %v575 = vshll.u32 %v574, 16
        %v576 = vadd.s32 %v575, %v573
        %s577 = vtos %v576
        %v578 = vstv %s577
        %vm579 = vcmp.eq.s32.totalorder %v349, %v578
        %v580 = vsel %vm579, 1, 0
        %v581 = vcvt.s32.f32 %v580
        %582 = vst.msk [vmem:[#allocation2 + $0x3] sm:$0x1] %vm488, %v581
        %vm583 = vcmp.eq.s32.totalorder %v349, 3
        %v584 = vsel %vm583, %v578, %v553
        %v585 = vld [vmem:[#allocation2] sm:$0xf]
        %v587 = vsel %vm425, %v585, 0
        %589 = vmatprep.subr.mxu0 0.0
        %590 = vmatpush1.msra.mxu0 %v242
        %591 = vmatprep.subr.mxu0 0.0
        %592 = vmatpush1.msra.mxu0 %v243
        %593 = vmatprep.subr.mxu0 0.0
        %594 = vmatpush1.msra.mxu0 0.0
        %595 = vmatprep.subr.mxu0 0.0
        %596 = vmatpush1.msra.mxu0 0.0
        %597 = vmatprep.subr.mxu0 0.0
        %598 = vmatpush1.msra.mxu0 0.0
        %599 = vmatprep.subr.mxu0 0.0
        %600 = vmatpush1.msra.mxu0 0.0
        %601 = vmatprep.subr.mxu0 0.0
        %602 = vmatpush1.msra.mxu0 0.0
        %603 = vmatprep.subr.mxu0 0.0
        %604 = vmatpush1.msra.mxu0 0.0
        %605 = vmatprep.subr.mxu0 0.0
        %606 = vmatpush1.msra.mxu0 0.0
        %607 = vmatprep.subr.mxu0 0.0
        %608 = vmatpush1.msra.mxu0 0.0
        %609 = vmatprep.subr.mxu0 0.0
        %610 = vmatpush1.msra.mxu0 0.0
        %611 = vmatprep.subr.mxu0 0.0
        %612 = vmatpush1.msra.mxu0 0.0
        %613 = vmatprep.subr.mxu0 0.0
        %614 = vmatpush1.msra.mxu0 0.0
        %615 = vmatprep.subr.mxu0 0.0
        %616 = vmatpush1.msra.mxu0 0.0
        %617 = vmatprep.subr.mxu0 0.0
        %618 = vmatpush1.msra.mxu0 0.0
        %619 = vmatprep.subr.mxu0 0.0
        %620 = vmatpush1.msra.mxu0 0.0
        %621 = vmatprep.subr.mxu0 0.0
        %622 = vmatpush1.msra.mxu0 0.0
        %623 = vmatprep.subr.mxu0 0.0
        %624 = vmatpush1.msra.mxu0 0.0
        %625 = vmatprep.subr.mxu0 0.0
        %626 = vmatpush1.msra.mxu0 0.0
        %627 = vmatprep.subr.mxu0 0.0
        %628 = vmatpush1.msra.mxu0 0.0
        %629 = vmatprep.subr.mxu0 0.0
        %630 = vmatpush1.msra.mxu0 0.0
        %631 = vmatprep.subr.mxu0 0.0
        %632 = vmatpush1.msra.mxu0 0.0
        %633 = vmatprep.subr.mxu0 0.0
        %634 = vmatpush1.msra.mxu0 0.0
        %635 = vmatprep.subr.mxu0 0.0
        %636 = vmatpush1.msra.mxu0 0.0
        %637 = vmatprep.subr.mxu0 0.0
        %638 = vmatpush1.msra.mxu0 0.0
        %639 = vmatprep.subr.mxu0 0.0
        %640 = vmatpush1.msra.mxu0 0.0
        %641 = vmatprep.subr.mxu0 0.0
        %642 = vmatpush1.msra.mxu0 0.0
        %643 = vmatprep.subr.mxu0 0.0
        %644 = vmatpush1.msra.mxu0 0.0
        %645 = vmatprep.subr.mxu0 0.0
        %646 = vmatpush1.msra.mxu0 0.0
        %647 = vmatprep.subr.mxu0 0.0
        %648 = vmatpush1.msra.mxu0 0.0
        %649 = vmatprep.subr.mxu0 0.0
        %650 = vmatpush1.msra.mxu0 0.0
        %651 = vmatprep.subr.mxu0 0.0
        %652 = vmatpush1.msra.mxu0 0.0
        %653 = vmatprep.mubr.f32.mxu0 0.0
        %654 = vmatmul.mubr.f32.gmra.mrb[0].mxu0 %v587
        %v655 = vpop.f32.mrb[0].mxu0
        %v656 = vadd.f32 0.0, %v655
        %v657 = vpop.f32.mrb[0].mxu0
        %658 = vdwg.mxu0
        %vm659 = vcmask 257024
        %660 = vst.msk [vmem:[%s234] sm:$0xf] %vm659, %v656
        %vm661 = vcmask 24576
        %662 = vst.msk [vmem:[%s240] sm:$0x1] %vm661, %v584
        %s663 = sand.u32 %s102, 1
        %s664 = scalar_lea.sflag [#allocation5], %s663
        %s665 = sand.u32 %s102, 1
        %s666 = smul.addr %s665, 4
        %s667 = scalar_lea.vmem [#allocation8], %s666
        %s668 = sand.u32 %s128, 1
        %s669 = scalar_lea.sflag [#allocation10], %s668
        %s670 = sand.u32 %s128, 1
        %s671 = scalar_lea.vmem [#allocation9], %s670
        // Predicated region
        $region41: #{tpu_custom_call.1} parent=31 // pred_check
          %p672 = pneg %p112
        $region42: #{tpu_custom_call.1} parent=31 // pred_check_branch
          %674 = sbr.rel (%p672) target = $region44
        $region43: #{tpu_custom_call.1} parent=31 // pred_region
          %s676 = ssub.s32 64, 64
          %677 = vsyncadd %s664, %s676
          %s678 = smul.addr %s26, 64
          %s679 = scalar_lea.hbm %s3, %s678
          %s681 = sshll.u32 %s667, 4
          %s682 = int_to_ptr.vmem [resolvable:$true] %s681
          %684 = dma.vmem_to_hbm [thread:$0]  %s682, 64, %s679, %s664
        $region44: #{tpu_custom_call.1} parent=31 // pred_fallthru
          _
        // Predicated region
        $region45: #{tpu_custom_call.1} parent=31 // pred_check
          %p685 = pneg %p138
        $region46: #{tpu_custom_call.1} parent=31 // pred_check_branch
          %687 = sbr.rel (%p685) target = $region48
        $region47: #{tpu_custom_call.1} parent=31 // pred_region
          %s689 = ssub.s32 16, 16
          %690 = vsyncadd %s669, %s689
          %s691 = smul.addr %s26, 16
          %s692 = scalar_lea.hbm %s4, %s691
          %s694 = sshll.u32 %s671, 4
          %s695 = int_to_ptr.vmem [resolvable:$true] %s694
          %697 = dma.vmem_to_hbm [thread:$0]  %s695, 16, %s692, %s669
        $region48: #{tpu_custom_call.1} parent=31 // pred_fallthru
          _
      $region32: #{tpu_custom_call.1} parent=5 // pred_fallthru
        _
      %p698 = scmp.le.s32.totalorder 2, %s21
      // Predicated region
      $region49: #{tpu_custom_call.1} parent=5 // pred_check
        %p699 = pneg %p698
      $region50: #{tpu_custom_call.1} parent=5 // pred_check_branch
        %701 = sbr.rel (%p699) target = $region52
      $region51: #{tpu_custom_call.1} parent=5 // pred_region
        %s702 = ssub.s32 %s21, 2
        // Predicated region
        $region53: #{tpu_custom_call.1} parent=51 // pred_check
          %p703 = pneg %p118
        $region54: #{tpu_custom_call.1} parent=51 // pred_check_branch
          %705 = sbr.rel (%p703) target = $region56
        $region55: #{tpu_custom_call.1} parent=51 // pred_region
          %s706 = sand.u32 %s103, 1
          %s707 = scalar_lea.sflag [#allocation5], %s706
          %s708 = sand.u32 %s103, 1
          %s709 = smul.addr %s708, 4
          %s710 = scalar_lea.vmem [#allocation8], %s709
          %711 = dma.done %s707, 64
        $region56: #{tpu_custom_call.1} parent=51 // pred_fallthru
          _
        // Predicated region
        $region57: #{tpu_custom_call.1} parent=51 // pred_check
          %p712 = pneg %p144
        $region58: #{tpu_custom_call.1} parent=51 // pred_check_branch
          %714 = sbr.rel (%p712) target = $region60
        $region59: #{tpu_custom_call.1} parent=51 // pred_region
          %s715 = sand.u32 %s129, 1
          %s716 = scalar_lea.sflag [#allocation10], %s715
          %s717 = sand.u32 %s129, 1
          %s718 = scalar_lea.vmem [#allocation9], %s717
          %719 = dma.done %s716, 16
        $region60: #{tpu_custom_call.1} parent=51 // pred_fallthru
          _
      $region52: #{tpu_custom_call.1} parent=5 // pred_fallthru
        _
    $region6: #{tpu_custom_call.1} parent=1 // loop_footer
      %s25 = sadd.s32 1, %s21
    $region7: #{tpu_custom_call.1} parent=1 // loop_footer_branch
      %20 = sbr.rel target = $region3
    $region8: #{tpu_custom_call.1} parent=1 // loop_exit
      _
    %720 = vsyncpa [#allocation4], 1
    %s721 = scalar_lea.sflag [#allocation4], 1
    %722 = vsyncpa %s721, 1
    %723 = vsyncpa [#allocation7], 1
    %724 = vsyncpa [#allocation5], 1
    %s725 = scalar_lea.sflag [#allocation5], 1
    %726 = vsyncpa %s725, 1
    %727 = vsyncpa [#allocation10], 1
    %s728 = scalar_lea.sflag [#allocation10], 1
    %729 = vsyncpa %s728, 1

// kernel: tpu_custom_call.1
$region0: #{tpu_custom_call.1}
  #allocation0 [shape = 'u32[]', space=smem, size = 0x4, offset = 0x4, fixed_abs, tag = 'smem constant byte address 0x4 - core index']
  #allocation1 [shape = 'u32[144,128]{1,0:T(1,128)}', space=vmem, size = 0x12000, scoped, tag = 'internal scratch']
  #allocation2 [shape = 'f32[4,16]{1,0:T(4,128)}', space=vmem, size = 0x800, scoped, tag = 'scratch operand']
  %s0 = inlined_call_operand.hbm [shape: f32[32,32], index: 0, kind: input, shape index: {}]
  %s1 = inlined_call_operand.hbm [shape: f32[32,256], index: 1, kind: input, shape index: {}]
  %s2 = inlined_call_operand.vmem [shape: f32[1,256], index: 2, kind: input, shape index: {}]
  %s3 = inlined_call_operand.hbm [shape: f32[2,4,32], index: 3, kind: output, shape index: {0}]
  %s4 = inlined_call_operand.hbm [shape: s32[2,1,4], index: 4, kind: output, shape index: {1}]
  %5 = xla_tuple %s3, %s4
  %s6 = sld [smem:[#allocation0]]
  $region61: #{tpu_custom_call.1} parent=0
    _
  %s8 = ssub.s32 1, %s6
  %s9 = scalar_select 0, %s8, %s6
  $region1: #{tpu_custom_call.1} parent=0
    #allocation3 [shape = 'u8[16384]{0}', space=vmem, size = 0x4000, scoped, tag = 'input window, operand 0']
    #allocation4 [shape = 's32[2]{0}', space=sflag, size = 0x8, scoped, tag = 'scoped memory for tpu_custom_call.1']
    #allocation5 [shape = 's32[2]{0}', space=sflag, size = 0x8, scoped, tag = 'scoped memory for tpu_custom_call.1']
    #allocation6 [shape = 'u8[32768]{0}', space=vmem, size = 0x8000, scoped, tag = 'input window, operand 1, single buffered']
    #allocation7 [shape = 's32[1]{0}', space=sflag, size = 0x4, scoped, tag = 'scoped memory for tpu_custom_call.1']
    #allocation8 [shape = 'u8[4096]{0}', space=vmem, size = 0x1000, scoped, tag = 'output window, operand 0']
    #allocation9 [shape = 'u8[1024]{0}', space=vmem, size = 0x400, scoped, tag = 'output window, operand 1']
    #allocation10 [shape = 's32[2]{0}', space=sflag, size = 0x8, scoped, tag = 'scoped memory for tpu_custom_call.1']
    %10 = vsyncpa [#allocation4], 0
    %s11 = scalar_lea.sflag [#allocation4], 1
    %12 = vsyncpa %s11, 0
    %13 = vsyncpa [#allocation7], 0
    %14 = vsyncpa [#allocation5], 0
    %s15 = scalar_lea.sflag [#allocation5], 1
    %16 = vsyncpa %s15, 0
    %17 = vsyncpa [#allocation10], 0
    %s18 = scalar_lea.sflag [#allocation10], 1
    %19 = vsyncpa %s18, 0
    loop: start=0, step=1, limit=4
    $region2: #{tpu_custom_call.1} parent=1 // loop_pre_header
      _
    $region3: #{tpu_custom_call.1} parent=1 // loop_header
      %s21 = sphi 0, %s25
      %p22 = scmp.ge.s32.totalorder %s21, 4
      %s31 = sphi 0, %s33
      %s34 = sphi 0, %s31
      %s35 = sphi 0, %s34
      %s51 = sphi 0, %s35
      %s55 = sphi 0, %s55
      %s57 = sphi 0, %s55
      %s58 = sphi 0, %s57
      %s72 = sphi 0, %s58
      %s76 = sphi 0, %s76
      %s78 = sphi 0, %s76
      %s79 = sphi 0, %s78
      %s93 = sphi 0, %s79
      %s99 = sphi 0, %s101
      %s102 = sphi 0, %s99
      %s103 = sphi 0, %s102
      %s119 = sphi 0, %s103
      %s125 = sphi 0, %s127
      %s128 = sphi 0, %s125
      %s129 = sphi 0, %s128
      %s145 = sphi 0, %s129
    $region4: #{tpu_custom_call.1} parent=1 // loop_header_branch
      %24 = sbr.rel (%p22) target = $region8
    $region5: #{tpu_custom_call.1} parent=1 // loop_body
      %s26 = ssub.s32 %s21, 1
      %s27 = ssub.s32 %s21, 2
      %s28 = sadd.s32 %s21, 1
      %s29 = ssub.s32 %s21, %s28
      %p30 = scmp.eq.s32.totalorder %s29, 0
      %s32 = sadd.s32 %s31, 1
      %s33 = scalar_select %p30, %s31, %s32
      %p36 = pneg %p30
      %p37 = scmp.eq.s32.totalorder %s21, 1
      %p38 = por %p36, %p37
      %p39 = scmp.ne.s32.totalorder %s31, %s34
      %p40 = scmp.eq.s32.totalorder %s21, 0
      %p41 = por %p39, %p40
      %p42 = scmp.ne.s32.totalorder %s31, %s34
      %p43 = scmp.eq.s32.totalorder %s26, 1
      %p44 = por %p42, %p43
      %p45 = scmp.ne.s32.totalorder %s34, %s35
      %p46 = scmp.eq.s32.totalorder %s26, 0
      %p47 = por %p45, %p46
      %p48 = scmp.ne.s32.totalorder %s34, %s35
      %p49 = scmp.eq.s32.totalorder %s27, 1
      %p50 = por %p48, %p49
      %p52 = scmp.ne.s32.totalorder %s35, %s51
      %p53 = scmp.eq.s32.totalorder %s27, 0
      %p54 = por %p52, %p53
      %s56 = sadd.s32 %s55, 1
      %p59 = scmp.eq.s32.totalorder %s21, 1
      %p60 = scmp.ne.s32.totalorder %s55, %s57
      %p61 = scmp.eq.s32.totalorder %s21, 0
      %p62 = por %p60, %p61
      %p63 = scmp.ne.s32.totalorder %s55, %s57
      %p64 = scmp.eq.s32.totalorder %s26, 1
      %p65 = por %p63, %p64
      %p66 = scmp.ne.s32.totalorder %s57, %s58
      %p67 = scmp.eq.s32.totalorder %s26, 0
      %p68 = por %p66, %p67
      %p69 = scmp.ne.s32.totalorder %s57, %s58
      %p70 = scmp.eq.s32.totalorder %s27, 1
      %p71 = por %p69, %p70
      %p73 = scmp.ne.s32.totalorder %s58, %s72
      %p74 = scmp.eq.s32.totalorder %s27, 0
      %p75 = por %p73, %p74
      %s77 = sadd.s32 %s76, 1
      %p80 = scmp.eq.s32.totalorder %s21, 1
      %p81 = scmp.ne.s32.totalorder %s76, %s78
      %p82 = scmp.eq.s32.totalorder %s21, 0
      %p83 = por %p81, %p82
      %p84 = scmp.ne.s32.totalorder %s76, %s78
      %p85 = scmp.eq.s32.totalorder %s26, 1
      %p86 = por %p84, %p85
      %p87 = scmp.ne.s32.totalorder %s78, %s79
      %p88 = scmp.eq.s32.totalorder %s26, 0
      %p89 = por %p87, %p88
      %p90 = scmp.ne.s32.totalorder %s78, %s79
      %p91 = scmp.eq.s32.totalorder %s27, 1
      %p92 = por %p90, %p91
      %p94 = scmp.ne.s32.totalorder %s79, %s93
      %p95 = scmp.eq.s32.totalorder %s27, 0
      %p96 = por %p94, %p95
      %s97 = ssub.s32 %s21, %s28
      %p98 = scmp.eq.s32.totalorder %s97, 0
      %s100 = sadd.s32 %s99, 1
      %s101 = scalar_select %p98, %s99, %s100
      %p104 = pneg %p98
      %p105 = scmp.eq.s32.totalorder %s21, 1
      %p106 = por %p104, %p105
      %p107 = scmp.ne.s32.totalorder %s99, %s102
      %p108 = scmp.eq.s32.totalorder %s21, 0
      %p109 = por %p107, %p108
      %p110 = scmp.ne.s32.totalorder %s99, %s102
      %p111 = scmp.eq.s32.totalorder %s26, 1
      %p112 = por %p110, %p111
      %p113 = scmp.ne.s32.totalorder %s102, %s103
      %p114 = scmp.eq.s32.totalorder %s26, 0
      %p115 = por %p113, %p114
      %p116 = scmp.ne.s32.totalorder %s102, %s103
      %p117 = scmp.eq.s32.totalorder %s27, 1
      %p118 = por %p116, %p117
      %p120 = scmp.ne.s32.totalorder %s103, %s119
      %p121 = scmp.eq.s32.totalorder %s27, 0
      %p122 = por %p120, %p121
      %s123 = ssub.s32 %s21, %s28
      %p124 = scmp.eq.s32.totalorder %s123, 0
      %s126 = sadd.s32 %s125, 1
      %s127 = scalar_select %p124, %s125, %s126
      %p130 = pneg %p124
      %p131 = scmp.eq.s32.totalorder %s21, 1
      %p132 = por %p130, %p131
      %p133 = scmp.ne.s32.totalorder %s125, %s128
      %p134 = scmp.eq.s32.totalorder %s21, 0
      %p135 = por %p133, %p134
      %p136 = scmp.ne.s32.totalorder %s125, %s128
      %p137 = scmp.eq.s32.totalorder %s26, 1
      %p138 = por %p136, %p137
      %p139 = scmp.ne.s32.totalorder %s128, %s129
      %p140 = scmp.eq.s32.totalorder %s26, 0
      %p141 = por %p139, %p140
      %p142 = scmp.ne.s32.totalorder %s128, %s129
      %p143 = scmp.eq.s32.totalorder %s27, 1
      %p144 = por %p142, %p143
      %p146 = scmp.ne.s32.totalorder %s129, %s145
      %p147 = scmp.eq.s32.totalorder %s27, 0
      %p148 = por %p146, %p147
      %p149 = scmp.le.s32.totalorder 1, %s21
      %p150 = scmp.lt.s32.totalorder %s21, 3
      %p151 = pnand %p149, %p150
      %p152 = pneg %p151
      // Predicated region
      $region9: #{tpu_custom_call.1} parent=5 // pred_check
        _
      $region10: #{tpu_custom_call.1} parent=5 // pred_check_branch
        %154 = sbr.rel (%p151) target = $region12
      $region11: #{tpu_custom_call.1} parent=5 // pred_region
        %s155 = ssub.s32 %s21, 1
        // Predicated region
        $region13: #{tpu_custom_call.1} parent=11 // pred_check
          %p156 = pneg %p68
        $region14: #{tpu_custom_call.1} parent=11 // pred_check_branch
          %158 = sbr.rel (%p156) target = $region16
        $region15: #{tpu_custom_call.1} parent=11 // pred_region
          %s160 = ssub.s32 1024, 1024
          %161 = vsyncadd [#allocation7], %s160
          %s162 = sshll.u32 [#allocation6], 4
          %s163 = int_to_ptr.vmem [resolvable:$true] %s162
          %168 = dma.hbm_to_vmem [thread:$0]  %s1, 1024, %s163, [#allocation7], 256, 256, 16
        $region16: #{tpu_custom_call.1} parent=11 // pred_fallthru
          _
        // Predicated region
        $region17: #{tpu_custom_call.1} parent=11 // pred_check
          %p169 = pneg %p89
        $region18: #{tpu_custom_call.1} parent=11 // pred_check_branch
          %171 = sbr.rel (%p169) target = $region20
        $region19: #{tpu_custom_call.1} parent=11 // pred_region
          _
        $region20: #{tpu_custom_call.1} parent=11 // pred_fallthru
          _
      $region12: #{tpu_custom_call.1} parent=5 // pred_fallthru
        _
      %p172 = scmp.lt.s32.totalorder %s21, 2
      // Predicated region
      $region21: #{tpu_custom_call.1} parent=5 // pred_check
        %p173 = pneg %p172
      $region22: #{tpu_custom_call.1} parent=5 // pred_check_branch
        %175 = sbr.rel (%p173) target = $region24
      $region23: #{tpu_custom_call.1} parent=5 // pred_region
        // Predicated region
        $region25: #{tpu_custom_call.1} parent=23 // pred_check
          %p176 = pneg %p41
        $region26: #{tpu_custom_call.1} parent=23 // pred_check_branch
          %178 = sbr.rel (%p176) target = $region28
        $region27: #{tpu_custom_call.1} parent=23 // pred_region
          %s179 = sand.u32 %s31, 1
          %s180 = scalar_lea.sflag [#allocation4], %s179
          %s181 = sand.u32 %s31, 1
          %s182 = smul.addr %s181, 16
          %s183 = scalar_lea.vmem [#allocation3], %s182
          %s184 = smul.u32 2, %s21
          %s186 = ssub.s32 256, 256
          %187 = vsyncadd %s180, %s186
          %s188 = smul.addr %s184, 128
          %s189 = scalar_lea.hbm %s0, %s188
          %s190 = sshll.u32 %s183, 4
          %s191 = int_to_ptr.vmem [resolvable:$true] %s190
          %196 = dma.hbm_to_vmem [thread:$0]  %s189, 256, %s191, %s180, 128, 128, 8
        $region28: #{tpu_custom_call.1} parent=23 // pred_fallthru
          _
      $region24: #{tpu_custom_call.1} parent=5 // pred_fallthru
        _
      %p197 = scmp.le.s32.totalorder 1, %s21
      %p198 = scmp.lt.s32.totalorder %s21, 3
      %p199 = pnand %p197, %p198
      %p200 = pneg %p199
      // Predicated region
      $region29: #{tpu_custom_call.1} parent=5 // pred_check
        _
      $region30: #{tpu_custom_call.1} parent=5 // pred_check_branch
        %202 = sbr.rel (%p199) target = $region32
      $region31: #{tpu_custom_call.1} parent=5 // pred_region
        %s203 = ssub.s32 %s21, 1
        %s204 = sand.u32 %s34, 1
        %s205 = scalar_lea.sflag [#allocation4], %s204
        %s206 = sand.u32 %s34, 1
        %s207 = smul.addr %s206, 16
        %s208 = scalar_lea.vmem [#allocation3], %s207
        // Predicated region
        $region33: #{tpu_custom_call.1} parent=31 // pred_check
          %p209 = pneg %p47
        $region34: #{tpu_custom_call.1} parent=31 // pred_check_branch
          %211 = sbr.rel (%p209) target = $region36
        $region35: #{tpu_custom_call.1} parent=31 // pred_region
          %212 = dma.done %s205, 256
        $region36: #{tpu_custom_call.1} parent=31 // pred_fallthru
          _
        // Predicated region
        $region37: #{tpu_custom_call.1} parent=31 // pred_check
          %p213 = pneg %p68
        $region38: #{tpu_custom_call.1} parent=31 // pred_check_branch
          %215 = sbr.rel (%p213) target = $region40
        $region39: #{tpu_custom_call.1} parent=31 // pred_region
          %216 = dma.done [#allocation7], 1024
        $region40: #{tpu_custom_call.1} parent=31 // pred_fallthru
          _
        %s217 = sand.u32 %s34, 1
        %s218 = scalar_lea.sflag [#allocation4], %s217
        %s219 = sand.u32 %s34, 1
        %s220 = smul.addr %s219, 16
        %s221 = scalar_lea.vmem [#allocation3], %s220
        %p222 = pneg %p47
        %p223 = pneg %p44
        %p224 = pneg %p68
        %p225 = pneg %p65
        %p226 = pneg %p89
        %p227 = pneg %p86
        %p228 = pneg %p115
        %p229 = pneg %p112
        %s230 = sand.u32 %s102, 1
        %s231 = scalar_lea.sflag [#allocation5], %s230
        %s232 = sand.u32 %s102, 1
        %s233 = smul.addr %s232, 4
        %s234 = scalar_lea.vmem [#allocation8], %s233
        %p235 = pneg %p141
        %p236 = pneg %p138
        %s237 = sand.u32 %s128, 1
        %s238 = scalar_lea.sflag [#allocation10], %s237
        %s239 = sand.u32 %s128, 1
        %s240 = scalar_lea.vmem [#allocation9], %s239
        %s241 = smul.u32 2, %s26
        %v242 = vld [vmem:[%s208] sm:$0xff]
        %v243 = vld [vmem:[%s208 + $0x8] sm:$0xff]
        %v244 = vld [vmem:[#allocation6] sm:$0xff]
        %v245 = vld [vmem:[#allocation6 + $0x8] sm:$0xff]
        %v246 = vld [vmem:[#allocation6 + $0x10] sm:$0xff]
        %v247 = vld [vmem:[#allocation6 + $0x18] sm:$0xff]
        %v248 = vld [vmem:[#allocation6 + $0x20] sm:$0xff]
        %v249 = vld [vmem:[#allocation6 + $0x28] sm:$0xff]
        %v250 = vld [vmem:[#allocation6 + $0x30] sm:$0xff]
        %v251 = vld [vmem:[#allocation6 + $0x38] sm:$0xff]
        %v252 = vld [vmem:[%s2] sm:$0x3]
        %v254 = vlaneseq
        %v255 = vshrl.u32 %v254, 7
        %v256 = vsub.s32 0, %v255
        %v257 = vrot.slane %v252, %v256
        %v258 = vlaneseq
        %v259 = vshrl.u32 %v258, 7
        %v260 = vsub.s32 1, %v259
        %v261 = vrot.slane %v252, %v260
        %vm264 = vcmask 261120
        %v266 = vsel %vm264, %v242, 0
        %v269 = vsel %vm264, %v243, 0
        %271 = vmatprep.subr.mxu0 %v245
        %272 = vmatpush1.msra.mxu0 %v244
        %273 = vmatprep.subr.mxu0 %v247
        %274 = vmatpush1.msra.mxu0 %v246
        %275 = vmatprep.subr.mxu0 %v249
        %276 = vmatpush1.msra.mxu0 %v248
        %277 = vmatprep.subr.mxu0 %v251
        %278 = vmatpush1.msra.mxu0 %v250
        %279 = vmatprep.subr.mxu0 0.0
        %280 = vmatpush1.msra.mxu0 0.0
        %281 = vmatprep.subr.mxu0 0.0
        %282 = vmatpush1.msra.mxu0 0.0
        %283 = vmatprep.subr.mxu0 0.0
        %284 = vmatpush1.msra.mxu0 0.0
        %285 = vmatprep.subr.mxu0 0.0
        %286 = vmatpush1.msra.mxu0 0.0
        %287 = vmatprep.subr.mxu0 0.0
        %288 = vmatpush1.msra.mxu0 0.0
        %289 = vmatprep.subr.mxu0 0.0
        %290 = vmatpush1.msra.mxu0 0.0
        %291 = vmatprep.subr.mxu0 0.0
        %292 = vmatpush1.msra.mxu0 0.0
        %293 = vmatprep.subr.mxu0 0.0
        %294 = vmatpush1.msra.mxu0 0.0
        %295 = vmatprep.subr.mxu0 0.0
        %296 = vmatpush1.msra.mxu0 0.0
        %297 = vmatprep.subr.mxu0 0.0
        %298 = vmatpush1.msra.mxu0 0.0
        %299 = vmatprep.subr.mxu0 0.0
        %300 = vmatpush1.msra.mxu0 0.0
        %301 = vmatprep.subr.mxu0 0.0
        %302 = vmatpush1.msra.mxu0 0.0
        %303 = vmatprep.subr.mxu0 0.0
        %304 = vmatpush1.msra.mxu0 0.0
        %305 = vmatprep.subr.mxu0 0.0
        %306 = vmatpush1.msra.mxu0 0.0
        %307 = vmatprep.subr.mxu0 0.0
        %308 = vmatpush1.msra.mxu0 0.0
        %309 = vmatprep.subr.mxu0 0.0
        %310 = vmatpush1.msra.mxu0 0.0
        %311 = vmatprep.subr.mxu0 0.0
        %312 = vmatpush1.msra.mxu0 0.0
        %313 = vmatprep.subr.mxu0 0.0
        %314 = vmatpush1.msra.mxu0 0.0
        %315 = vmatprep.subr.mxu0 0.0
        %316 = vmatpush1.msra.mxu0 0.0
        %317 = vmatprep.subr.mxu0 0.0
        %318 = vmatpush1.msra.mxu0 0.0
        %319 = vmatprep.subr.mxu0 0.0
        %320 = vmatpush1.msra.mxu0 0.0
        %321 = vmatprep.subr.mxu0 0.0
        %322 = vmatpush1.msra.mxu0 0.0
        %323 = vmatprep.subr.mxu0 0.0
        %324 = vmatpush1.msra.mxu0 0.0
        %325 = vmatprep.subr.mxu0 0.0
        %326 = vmatpush1.msra.mxu0 0.0
        %327 = vmatprep.subr.mxu0 0.0
        %328 = vmatpush1.msra.mxu0 0.0
        %329 = vmatprep.subr.mxu0 0.0
        %330 = vmatpush1.msra.mxu0 0.0
        %331 = vmatprep.subr.mxu0 0.0
        %332 = vmatpush1.msra.mxu0 0.0
        %333 = vmatprep.subr.mxu0 0.0
        %334 = vmatpush1.msra.mxu0 0.0
        %335 = vmatprep.mubr.f32.mxu0 0.0
        %336 = vmatmul.mubr.f32.gmra.mrb[0].mxu0 %v266
        %v337 = vpop.f32.mrb[0].mxu0
        %v338 = vadd.f32 %v257, %v337
        %v339 = vpop.f32.mrb[0].mxu0
        %v340 = vadd.f32 %v261, %v339
        %341 = vmatprep.mubr.f32.mxu0 0.0
        %342 = vmatmul.mubr.f32.gmra.mrb[0].mxu0 %v269
        %v343 = vpop.f32.mrb[0].mxu0
        %v344 = vadd.f32 %v257, %v343
        %v345 = vpop.f32.mrb[0].mxu0
        %v346 = vadd.f32 %v261, %v345
        %347 = vdwg.mxu0
        %v348 = vlaneseq
        %v349 = vand.u32 %v348, 127
        %350 = vmatprep.subr.mxu0 0.0
        %351 = vmatpush1.xpose.msra.mxu0 %v340
        %352 = vmatprep.subr.mxu0 0.0
        %353 = vmatpush1.xpose.msra.mxu0 %v346
        %354 = vmatprep.subr.mxu0 0.0
        %355 = vmatpush1.xpose.msra.mxu0 0.0
        %356 = vmatprep.subr.mxu0 0.0
        %357 = vmatpush1.xpose.msra.mxu0 0.0
        %358 = vmatprep.subr.mxu0 0.0
        %359 = vmatpush1.xpose.msra.mxu0 0.0
        %360 = vmatprep.subr.mxu0 0.0
        %361 = vmatpush1.xpose.msra.mxu0 0.0
        %362 = vmatprep.subr.mxu0 0.0
        %363 = vmatpush1.xpose.msra.mxu0 0.0
        %364 = vmatprep.subr.mxu0 0.0
        %365 = vmatpush1.xpose.msra.mxu0 0.0
        %366 = vmatprep.subr.mxu0 0.0
        %367 = vmatpush1.xpose.msra.mxu0 0.0
        %368 = vmatprep.subr.mxu0 0.0
        %369 = vmatpush1.xpose.msra.mxu0 0.0
        %370 = vmatprep.subr.mxu0 0.0
        %371 = vmatpush1.xpose.msra.mxu0 0.0
        %372 = vmatprep.subr.mxu0 0.0
        %373 = vmatpush1.xpose.msra.mxu0 0.0
        %374 = vmatprep.subr.mxu0 0.0
        %375 = vmatpush1.xpose.msra.mxu0 0.0
        %376 = vmatprep.subr.mxu0 0.0
        %377 = vmatpush1.xpose.msra.mxu0 0.0
        %378 = vmatprep.subr.mxu0 0.0
        %379 = vmatpush1.xpose.msra.mxu0 0.0
        %380 = vmatprep.subr.mxu0 0.0
        %381 = vmatpush1.xpose.msra.mxu0 0.0
        %382 = vmatprep.subr.mxu0 0.0
        %383 = vmatpush1.xpose.msra.mxu0 0.0
        %384 = vmatprep.subr.mxu0 0.0
        %385 = vmatpush1.xpose.msra.mxu0 0.0
        %386 = vmatprep.subr.mxu0 0.0
        %387 = vmatpush1.xpose.msra.mxu0 0.0
        %388 = vmatprep.subr.mxu0 0.0
        %389 = vmatpush1.xpose.msra.mxu0 0.0
        %390 = vmatprep.subr.mxu0 0.0
        %391 = vmatpush1.xpose.msra.mxu0 0.0
        %392 = vmatprep.subr.mxu0 0.0
        %393 = vmatpush1.xpose.msra.mxu0 0.0
        %394 = vmatprep.subr.mxu0 0.0
        %395 = vmatpush1.xpose.msra.mxu0 0.0
        %396 = vmatprep.subr.mxu0 0.0
        %397 = vmatpush1.xpose.msra.mxu0 0.0
        %398 = vmatprep.subr.mxu0 0.0
        %399 = vmatpush1.xpose.msra.mxu0 0.0
        %400 = vmatprep.subr.mxu0 0.0
        %401 = vmatpush1.xpose.msra.mxu0 0.0
        %402 = vmatprep.subr.mxu0 0.0
        %403 = vmatpush1.xpose.msra.mxu0 0.0
        %404 = vmatprep.subr.mxu0 0.0
        %405 = vmatpush1.xpose.msra.mxu0 0.0
        %406 = vmatprep.subr.mxu0 0.0
        %407 = vmatpush1.xpose.msra.mxu0 0.0
        %408 = vmatprep.subr.mxu0 0.0
        %409 = vmatpush1.xpose.msra.mxu0 0.0
        %410 = vmatprep.subr.mxu0 0.0
        %411 = vmatpush1.xpose.msra.mxu0 0.0
        %412 = vmatprep.subr.mxu0 0.0
        %413 = vmatpush1.xpose.msra.mxu0 0.0
        %414 = vmatprep.mubr.f32.mxu0 0.0
        %415 = vmatmul.mubr.f32.gmra.mrb[0].mxu0 %v338
        %v416 = vpop.f32.mrb[0].mxu0
        %v417 = vadd.f32 0.0, %v416
        %v418 = vpop.f32.mrb[0].mxu0
        %419 = vmatprep.mubr.f32.mxu0 0.0
        %420 = vmatmul.mubr.f32.gmra.mrb[0].mxu0 %v344
        %v421 = vpop.f32.mrb[0].mxu0
        %v422 = vadd.f32 0.0, %v421
        %v423 = vpop.f32.mrb[0].mxu0
        %424 = vdwg.mxu0
        %vm425 = vcmask 130048
        %v426 = vsel %vm425, %v417, -inf
        %427 = vmax.xlane.f32.xlu0 %v426
        %v428 = vpop.xlane.xlu0 %427
        %v429 = vsel %vm425, %v422, -inf
        %430 = vmax.xlane.f32.xlu0 %v429
        %v431 = vpop.xlane.xlu0 %430
        %v432 = vsub.f32 %v417, %v428
        %v433 = vsub.f32 %v422, %v431
        %v434 = vmul.f32 %v432, 1.442695
        %v435 = vpow.pop %v434
        %v436 = vmul.f32 %v433, 1.442695
        %v437 = vpow.pop %v436
        %v438 = vsel %vm425, %v435, 0.0
        %439 = vadd.xlane.f32.xlu0 %v438
        %v440 = vpop.xlane.xlu0 %439
        %v441 = vsel %vm425, %v437, 0.0
        %442 = vadd.xlane.f32.xlu0 %v441
        %v443 = vpop.xlane.xlu0 %442
        %v444 = vrcp.pop %v440
        %v445 = vmul.f32 1.0, %v444
        %v446 = vrcp.pop %v443
        %v447 = vmul.f32 1.0, %v446
        %v448 = vmul.f32 %v435, %v445
        %v449 = vmul.f32 %v437, %v447
        %v450 = vsel %vm425, %v448, 0.0
        %v451 = vsel %vm425, %v449, 0.0
        %v452 = vadd.f32 %v450, %v451
        %v453 = vrot.slane %v452, 4
        %v454 = vadd.f32 %v452, %v453
        %v455 = vrot.slane %v454, 2
        %v456 = vadd.f32 %v454, %v455
        %v457 = vrot.slane %v456, 1
        %v458 = vadd.f32 %v456, %v457
        %v459 = vadd.f32 %v458, 0.0
        %v460 = vmul.f32 %v459, 0.0625
        %v461 = vsel %vm425, %v460, -inf
        %462 = vmax.xlane.f32.xlu0 %v461
        %v463 = vpop.xlane.xlu0 %462
        %s464 = vtos %v463
        %v465 = vstv %s464
        %vm466 = vcmp.eq.f32.partialorder %v460, %v465
        %v467 = vsel %vm466, %v349, 16
        %v468 = vsel %vm425, %v467, 2147483647
        %v469 = vand.u32 %v468, 65535
        %v470 = vshra.s32 %v468, 16
        %v471 = vcvt.s32.f32 %v469
        %v472 = vcvt.s32.f32 %v470
        %473 = vmin.xlane.f32.xlu0 %v472
        %v474 = vpop.xlane.xlu0 %473
        %vm475 = vcmp.eq.f32.partialorder %v472, %v474
        %v476 = vsel %vm475, %v471, inf
        %477 = vmin.xlane.f32.xlu0 %v476
        %v478 = vpop.xlane.xlu0 %477
        %v479 = vcvt.f32.s32 %v478
        %v480 = vcvt.f32.s32 %v474
        %v481 = vshll.u32 %v480, 16
        %v482 = vadd.s32 %v481, %v479
        %s483 = vtos %v482
        %v484 = vstv %s483
        %vm485 = vcmp.eq.s32.totalorder %v349, %v484
        %v486 = vsel %vm485, 1, 0
        %v487 = vcvt.s32.f32 %v486
        %vm488 = vcmask 122880
        %489 = vst.msk [vmem:[#allocation2] sm:$0x1] %vm488, %v487
        %vm490 = vcmp.eq.s32.totalorder %v349, 0
        %v491 = vsel %vm490, %v484, 0
        %v492 = vsel %vm485, -inf, %v460
        %v493 = vsel %vm425, %v492, -inf
        %494 = vmax.xlane.f32.xlu0 %v493
        %v495 = vpop.xlane.xlu0 %494
        %s496 = vtos %v495
        %v497 = vstv %s496
        %vm498 = vcmp.eq.f32.partialorder %v492, %v497
        %v499 = vsel %vm498, %v349, 16
        %v500 = vsel %vm425, %v499, 2147483647
        %v501 = vand.u32 %v500, 65535
        %v502 = vshra.s32 %v500, 16
        %v503 = vcvt.s32.f32 %v501
        %v504 = vcvt.s32.f32 %v502
        %505 = vmin.xlane.f32.xlu0 %v504
        %v506 = vpop.xlane.xlu0 %505
        %vm507 = vcmp.eq.f32.partialorder %v504, %v506
        %v508 = vsel %vm507, %v503, inf
        %509 = vmin.xlane.f32.xlu0 %v508
        %v510 = vpop.xlane.xlu0 %509
        %v511 = vcvt.f32.s32 %v510
        %v512 = vcvt.f32.s32 %v506
        %v513 = vshll.u32 %v512, 16
        %v514 = vadd.s32 %v513, %v511
        %s515 = vtos %v514
        %v516 = vstv %s515
        %vm517 = vcmp.eq.s32.totalorder %v349, %v516
        %v518 = vsel %vm517, 1, 0
        %v519 = vcvt.s32.f32 %v518
        %520 = vst.msk [vmem:[#allocation2 + $0x1] sm:$0x1] %vm488, %v519
        %vm521 = vcmp.eq.s32.totalorder %v349, 1
        %v522 = vsel %vm521, %v516, %v491
        %v523 = vsel %vm517, -inf, %v492
        %v524 = vsel %vm425, %v523, -inf
        %525 = vmax.xlane.f32.xlu0 %v524
        %v526 = vpop.xlane.xlu0 %525
        %s527 = vtos %v526
        %v528 = vstv %s527
        %vm529 = vcmp.eq.f32.partialorder %v523, %v528
        %v530 = vsel %vm529, %v349, 16
        %v531 = vsel %vm425, %v530, 2147483647
        %v532 = vand.u32 %v531, 65535
        %v533 = vshra.s32 %v531, 16
        %v534 = vcvt.s32.f32 %v532
        %v535 = vcvt.s32.f32 %v533
        %536 = vmin.xlane.f32.xlu0 %v535
        %v537 = vpop.xlane.xlu0 %536
        %vm538 = vcmp.eq.f32.partialorder %v535, %v537
        %v539 = vsel %vm538, %v534, inf
        %540 = vmin.xlane.f32.xlu0 %v539
        %v541 = vpop.xlane.xlu0 %540
        %v542 = vcvt.f32.s32 %v541
        %v543 = vcvt.f32.s32 %v537
        %v544 = vshll.u32 %v543, 16
        %v545 = vadd.s32 %v544, %v542
        %s546 = vtos %v545
        %v547 = vstv %s546
        %vm548 = vcmp.eq.s32.totalorder %v349, %v547
        %v549 = vsel %vm548, 1, 0
        %v550 = vcvt.s32.f32 %v549
        %551 = vst.msk [vmem:[#allocation2 + $0x2] sm:$0x1] %vm488, %v550
        %vm552 = vcmp.eq.s32.totalorder %v349, 2
        %v553 = vsel %vm552, %v547, %v522
        %v554 = vsel %vm548, -inf, %v523
        %v555 = vsel %vm425, %v554, -inf
        %556 = vmax.xlane.f32.xlu0 %v555
        %v557 = vpop.xlane.xlu0 %556
        %s558 = vtos %v557
        %v559 = vstv %s558
        %vm560 = vcmp.eq.f32.partialorder %v554, %v559
        %v561 = vsel %vm560, %v349, 16
        %v562 = vsel %vm425, %v561, 2147483647
        %v563 = vand.u32 %v562, 65535
        %v564 = vshra.s32 %v562, 16
        %v565 = vcvt.s32.f32 %v563
        %v566 = vcvt.s32.f32 %v564
        %567 = vmin.xlane.f32.xlu0 %v566
        %v568 = vpop.xlane.xlu0 %567
        %vm569 = vcmp.eq.f32.partialorder %v566, %v568
        %v570 = vsel %vm569, %v565, inf
        %571 = vmin.xlane.f32.xlu0 %v570
        %v572 = vpop.xlane.xlu0 %571
        %v573 = vcvt.f32.s32 %v572
        %v574 = vcvt.f32.s32 %v568
        %v575 = vshll.u32 %v574, 16
        %v576 = vadd.s32 %v575, %v573
        %s577 = vtos %v576
        %v578 = vstv %s577
        %vm579 = vcmp.eq.s32.totalorder %v349, %v578
        %v580 = vsel %vm579, 1, 0
        %v581 = vcvt.s32.f32 %v580
        %582 = vst.msk [vmem:[#allocation2 + $0x3] sm:$0x1] %vm488, %v581
        %vm583 = vcmp.eq.s32.totalorder %v349, 3
        %v584 = vsel %vm583, %v578, %v553
        %v585 = vld [vmem:[#allocation2] sm:$0xf]
        %v587 = vsel %vm425, %v585, 0
        %589 = vmatprep.subr.mxu0 0.0
        %590 = vmatpush1.msra.mxu0 %v242
        %591 = vmatprep.subr.mxu0 0.0
        %592 = vmatpush1.msra.mxu0 %v243
        %593 = vmatprep.subr.mxu0 0.0
        %594 = vmatpush1.msra.mxu0 0.0
        %595 = vmatprep.subr.mxu0 0.0
        %596 = vmatpush1.msra.mxu0 0.0
        %597 = vmatprep.subr.mxu0 0.0
        %598 = vmatpush1.msra.mxu0 0.0
        %599 = vmatprep.subr.mxu0 0.0
        %600 = vmatpush1.msra.mxu0 0.0
        %601 = vmatprep.subr.mxu0 0.0
        %602 = vmatpush1.msra.mxu0 0.0
        %603 = vmatprep.subr.mxu0 0.0
        %604 = vmatpush1.msra.mxu0 0.0
        %605 = vmatprep.subr.mxu0 0.0
        %606 = vmatpush1.msra.mxu0 0.0
        %607 = vmatprep.subr.mxu0 0.0
        %608 = vmatpush1.msra.mxu0 0.0
        %609 = vmatprep.subr.mxu0 0.0
        %610 = vmatpush1.msra.mxu0 0.0
        %611 = vmatprep.subr.mxu0 0.0
        %612 = vmatpush1.msra.mxu0 0.0
        %613 = vmatprep.subr.mxu0 0.0
        %614 = vmatpush1.msra.mxu0 0.0
        %615 = vmatprep.subr.mxu0 0.0
        %616 = vmatpush1.msra.mxu0 0.0
        %617 = vmatprep.subr.mxu0 0.0
        %618 = vmatpush1.msra.mxu0 0.0
        %619 = vmatprep.subr.mxu0 0.0
        %620 = vmatpush1.msra.mxu0 0.0
        %621 = vmatprep.subr.mxu0 0.0
        %622 = vmatpush1.msra.mxu0 0.0
        %623 = vmatprep.subr.mxu0 0.0
        %624 = vmatpush1.msra.mxu0 0.0
        %625 = vmatprep.subr.mxu0 0.0
        %626 = vmatpush1.msra.mxu0 0.0
        %627 = vmatprep.subr.mxu0 0.0
        %628 = vmatpush1.msra.mxu0 0.0
        %629 = vmatprep.subr.mxu0 0.0
        %630 = vmatpush1.msra.mxu0 0.0
        %631 = vmatprep.subr.mxu0 0.0
        %632 = vmatpush1.msra.mxu0 0.0
        %633 = vmatprep.subr.mxu0 0.0
        %634 = vmatpush1.msra.mxu0 0.0
        %635 = vmatprep.subr.mxu0 0.0
        %636 = vmatpush1.msra.mxu0 0.0
        %637 = vmatprep.subr.mxu0 0.0
        %638 = vmatpush1.msra.mxu0 0.0
        %639 = vmatprep.subr.mxu0 0.0
        %640 = vmatpush1.msra.mxu0 0.0
        %641 = vmatprep.subr.mxu0 0.0
        %642 = vmatpush1.msra.mxu0 0.0
        %643 = vmatprep.subr.mxu0 0.0
        %644 = vmatpush1.msra.mxu0 0.0
        %645 = vmatprep.subr.mxu0 0.0
        %646 = vmatpush1.msra.mxu0 0.0
        %647 = vmatprep.subr.mxu0 0.0
        %648 = vmatpush1.msra.mxu0 0.0
        %649 = vmatprep.subr.mxu0 0.0
        %650 = vmatpush1.msra.mxu0 0.0
        %651 = vmatprep.subr.mxu0 0.0
        %652 = vmatpush1.msra.mxu0 0.0
        %653 = vmatprep.mubr.f32.mxu0 0.0
        %654 = vmatmul.mubr.f32.gmra.mrb[0].mxu0 %v587
        %v655 = vpop.f32.mrb[0].mxu0
        %v656 = vadd.f32 0.0, %v655
        %v657 = vpop.f32.mrb[0].mxu0
        %658 = vdwg.mxu0
        %vm659 = vcmask 257024
        %660 = vst.msk [vmem:[%s234] sm:$0xf] %vm659, %v656
        %vm661 = vcmask 24576
        %662 = vst.msk [vmem:[%s240] sm:$0x1] %vm661, %v584
        %s663 = sand.u32 %s102, 1
        %s664 = scalar_lea.sflag [#allocation5], %s663
        %s665 = sand.u32 %s102, 1
        %s666 = smul.addr %s665, 4
        %s667 = scalar_lea.vmem [#allocation8], %s666
        %s668 = sand.u32 %s128, 1
        %s669 = scalar_lea.sflag [#allocation10], %s668
        %s670 = sand.u32 %s128, 1
        %s671 = scalar_lea.vmem [#allocation9], %s670
        // Predicated region
        $region41: #{tpu_custom_call.1} parent=31 // pred_check
          %p672 = pneg %p112
        $region42: #{tpu_custom_call.1} parent=31 // pred_check_branch
          %674 = sbr.rel (%p672) target = $region44
        $region43: #{tpu_custom_call.1} parent=31 // pred_region
          %s676 = ssub.s32 64, 64
          %677 = vsyncadd %s664, %s676
          %s678 = smul.addr %s26, 64
          %s679 = scalar_lea.hbm %s3, %s678
          %s681 = sshll.u32 %s667, 4
          %s682 = int_to_ptr.vmem [resolvable:$true] %s681
          %684 = dma.vmem_to_hbm [thread:$0]  %s682, 64, %s679, %s664
        $region44: #{tpu_custom_call.1} parent=31 // pred_fallthru
          _
        // Predicated region
        $region45: #{tpu_custom_call.1} parent=31 // pred_check
          %p685 = pneg %p138
        $region46: #{tpu_custom_call.1} parent=31 // pred_check_branch
          %687 = sbr.rel (%p685) target = $region48
        $region47: #{tpu_custom_call.1} parent=31 // pred_region
          %s689 = ssub.s32 16, 16
          %690 = vsyncadd %s669, %s689
          %s691 = smul.addr %s26, 16
          %s692 = scalar_lea.hbm %s4, %s691
          %s694 = sshll.u32 %s671, 4
          %s695 = int_to_ptr.vmem [resolvable:$true] %s694
          %697 = dma.vmem_to_hbm [thread:$0]  %s695, 16, %s692, %s669
        $region48: #{tpu_custom_call.1} parent=31 // pred_fallthru
          _
      $region32: #{tpu_custom_call.1} parent=5 // pred_fallthru
        _
      %p698 = scmp.le.s32.totalorder 2, %s21
      // Predicated region
      $region49: #{tpu_custom_call.1} parent=5 // pred_check
        %p699 = pneg %p698
      $region50: #{tpu_custom_call.1} parent=5 // pred_check_branch
        %701 = sbr.rel (%p699) target = $region52
      $region51: #{tpu_custom_call.1} parent=5 // pred_region
        %s702 = ssub.s32 %s21, 2
        // Predicated region
        $region53: #{tpu_custom_call.1} parent=51 // pred_check
          %p703 = pneg %p118
        $region54: #{tpu_custom_call.1} parent=51 // pred_check_branch
          %705 = sbr.rel (%p703) target = $region56
        $region55: #{tpu_custom_call.1} parent=51 // pred_region
          %s706 = sand.u32 %s103, 1
          %s707 = scalar_lea.sflag [#allocation5], %s706
          %s708 = sand.u32 %s103, 1
          %s709 = smul.addr %s708, 4
          %s710 = scalar_lea.vmem [#allocation8], %s709
          %711 = dma.done %s707, 64
        $region56: #{tpu_custom_call.1} parent=51 // pred_fallthru
          _
        // Predicated region
        $region57: #{tpu_custom_call.1} parent=51 // pred_check
          %p712 = pneg %p144
        $region58: #{tpu_custom_call.1} parent=51 // pred_check_branch
          %714 = sbr.rel (%p712) target = $region60
        $region59: #{tpu_custom_call.1} parent=51 // pred_region
          %s715 = sand.u32 %s129, 1
          %s716 = scalar_lea.sflag [#allocation10], %s715
          %s717 = sand.u32 %s129, 1
          %s718 = scalar_lea.vmem [#allocation9], %s717
          %719 = dma.done %s716, 16
        $region60: #{tpu_custom_call.1} parent=51 // pred_fallthru
          _
      $region52: #{tpu_custom_call.1} parent=5 // pred_fallthru
        _
    $region6: #{tpu_custom_call.1} parent=1 // loop_footer
      %s25 = sadd.s32 1, %s21
    $region7: #{tpu_custom_call.1} parent=1 // loop_footer_branch
      %20 = sbr.rel target = $region3
    $region8: #{tpu_custom_call.1} parent=1 // loop_exit
      _
    %720 = vsyncpa [#allocation4], 1
    %s721 = scalar_lea.sflag [#allocation4], 1
    %722 = vsyncpa %s721, 1
    %723 = vsyncpa [#allocation7], 1
    %724 = vsyncpa [#allocation5], 1
    %s725 = scalar_lea.sflag [#allocation5], 1
    %726 = vsyncpa %s725, 1
    %727 = vsyncpa [#allocation10], 1
    %s728 = scalar_lea.sflag [#allocation10], 1
    %729 = vsyncpa %s728, 1

</llo_original>
